<compile_context>
chip_gen: v5e
topology: v5e:2x2
jax: 0.10.0
libtpu: 0.0.40
codegen_flags: <defaults>
</compile_context>

<pallas_src>
import functools

import numpy as np
import jax
import jax.numpy as jnp
from jax.experimental import pallas as pl
from jax.experimental.pallas import tpu as pltpu


DEC_CHANNELS = 128
HEAD_ORDER = ("mask", "rotation", "translation", "scales")
_VMEM_LIMIT = 32 * 1024 * 1024


def _round_up(x, m):
    return (x + m - 1) // m * m


def _pick_tile(total, candidates=(2048, 1024, 512, 256, 128)):
    for c in candidates:
        if c <= total and total % c == 0:
            return c
    return total


def _head_widths(classes):
    return {"mask": classes,
            "rotation": 4 * (classes - 1),
            "translation": 3 * (classes - 1),
            "scales": 3 * (classes - 1)}


# ---------------------------------------------------------------------------
# Pallas kernels
# ---------------------------------------------------------------------------
def _fused_heads_kernel(x_ref, wd_ref, bd_ref, wh_ref, bh_ref, o_ref):
    # x_ref : [1, K=Cin*16, TP] bf16   (im2col'd 4x4 patches, pixels on lanes)
    # wd_ref: [4*128, K] bf16          (4 stand-in decoders stacked, pool folded)
    # wh_ref: [CHP, 4*128] bf16        (block-diagonal: all 4 heads)
    # out   : [1, CHP, TP] f32         (lane-dense pixel axis)
    x = x_ref[0]
    feat = jnp.dot(wd_ref[...], x, preferred_element_type=jnp.float32)
    feat = jnp.maximum(feat + bd_ref[...], 0.0)                    # [512, TP]
    y = jnp.dot(wh_ref[...], feat.astype(jnp.bfloat16),
                preferred_element_type=jnp.float32)                # [CHP, TP]
    o_ref[0] = y + bh_ref[...]


def fused_decoders_and_heads(patches, wd, bd, wh, bh, tp):
    """patches [N, K, HdWdp] bf16 -> low-res head logits [N, CHP, HdWdp] f32."""
    n, k, hdwdp = patches.shape
    d = wd.shape[0]
    chp = wh.shape[0]
    grid = (n, hdwdp // tp)
    return pl.pallas_call(
        _fused_heads_kernel,
        out_shape=jax.ShapeDtypeStruct((n, chp, hdwdp), jnp.float32),
        grid=grid,
        in_specs=[
            pl.BlockSpec((1, k, tp), lambda i, j: (i, 0, j)),
            pl.BlockSpec((d, k), lambda i, j: (0, 0)),
            pl.BlockSpec((d, 1), lambda i, j: (0, 0)),
            pl.BlockSpec((chp, d), lambda i, j: (0, 0)),
            pl.BlockSpec((chp, 1), lambda i, j: (0, 0)),
        ],
        out_specs=pl.BlockSpec((1, chp, tp), lambda i, j: (i, 0, j)),
        compiler_params=pltpu.CompilerParams(
            dimension_semantics=("parallel", "parallel"),
            vmem_limit_bytes=_VMEM_LIMIT),
    )(patches, wd, bd, wh, bh)


def _upsample_kernel(low_ref, a_ref, o_ref):
    o_ref[...] = jnp.dot(low_ref[...], a_ref[...],
                         preferred_element_type=jnp.float32)


def bilinear_upsample4_all(low_rows, a2dt):
    """low_rows [Rp, HdWdp] f32 @ kron operator [HdWdp, HWp] -> [Rp, HWp] f32."""
    rp, hdwdp = low_rows.shape
    hwp = a2dt.shape[1]
    tr = 8                       # Rp is padded to a multiple of 8
    tc = _pick_tile(hwp)         # lane-dense output tile (multiple of 128)
    grid = (rp // tr, hwp // tc)
    return pl.pallas_call(
        _upsample_kernel,
        out_shape=jax.ShapeDtypeStruct((rp, hwp), jnp.float32),
        grid=grid,
        in_specs=[
            pl.BlockSpec((tr, hdwdp), lambda i, j: (i, 0)),
            pl.BlockSpec((hdwdp, tc), lambda i, j: (0, j)),
        ],
        out_specs=pl.BlockSpec((tr, tc), lambda i, j: (i, j)),
        compiler_params=pltpu.CompilerParams(
            dimension_semantics=("parallel", "parallel"),
            vmem_limit_bytes=_VMEM_LIMIT),
    )(low_rows, a2dt)


def _channel_argmax_kernel(x_ref, o_ref):
    # argmax over the (small) channel axis; first-max tie break like torch.
    x = x_ref[...]                                           # [1, C, TL]
    m = jnp.max(x, axis=1, keepdims=True)
    idx = jax.lax.broadcasted_iota(jnp.int32, x.shape, 1)
    cand = jnp.where(x == m, idx, jnp.int32(x.shape[1]))
    o_ref[...] = jnp.min(cand, axis=1, keepdims=True)


def channel_argmax(x):
    """x [N, C, HWp] f32 -> [N, 1, HWp] int32, argmax over C (lane-dense out)."""
    n, c, hwp = x.shape
    tl = _pick_tile(hwp)
    grid = (n, hwp // tl)
    return pl.pallas_call(
        _channel_argmax_kernel,
        out_shape=jax.ShapeDtypeStruct((n, 1, hwp), jnp.int32),
        grid=grid,
        in_specs=[pl.BlockSpec((1, c, tl), lambda i, j: (i, 0, j))],
        out_specs=pl.BlockSpec((1, 1, tl), lambda i, j: (i, 0, j)),
        compiler_params=pltpu.CompilerParams(
            dimension_semantics=("parallel", "parallel"),
            vmem_limit_bytes=_VMEM_LIMIT),
    )(x)


# ---------------------------------------------------------------------------
# UpsamplingBilinear2d(scale_factor=4, align_corners=True) operator
# ---------------------------------------------------------------------------
def _upsample_matrix(n_in, n_out):
    A = np.zeros((n_out, n_in), dtype=np.float32)
    if n_in == 1:
        A[:, 0] = 1.0
        return A
    scale = (n_in - 1) / (n_out - 1)
    for i in range(n_out):
        src = i * scale
        lo = int(np.floor(src))
        hi = min(lo + 1, n_in - 1)
        frac = src - lo
        A[i, lo] += 1.0 - frac
        A[i, hi] += frac
    return A


def _kron_upsample_operator(hd, wd, hdwdp, hwp):
    # TODO(synk): the dense kron operator only scales to small Hd*Wd; for large
    # feature maps switch to a separable (rows then columns) in-kernel form.
    ah = _upsample_matrix(hd, 4 * hd)                 # [Hout, Hd]
    aw = _upsample_matrix(wd, 4 * wd)                 # [Wout, Wd]
    a2dt = np.kron(ah, aw).T.astype(np.float32)       # [Hd*Wd, Hout*Wout]
    out = np.zeros((hdwdp, hwp), np.float32)          # zero rows kill pixel pad
    out[:a2dt.shape[0], :a2dt.shape[1]] = a2dt
    return jnp.asarray(out)


# ---------------------------------------------------------------------------
# Parameters (deterministic synthetic init; shapes from the module __init__)
# ---------------------------------------------------------------------------
def init_params(key, in_channels=3, classes=2, dec_channels=DEC_CHANNELS):
    widths = _head_widths(classes)
    c12 = sum(widths[n] for n in HEAD_ORDER)
    chp = _round_up(c12, 8)
    n_heads = len(HEAD_ORDER)

    wdec, bdec, whead, bhead = [], [], [], []
    for name in HEAD_ORDER:
        cout = widths[name]
        key, k1, k2, k3, k4 = jax.random.split(key, 5)
        wdec.append(0.1 * jax.random.normal(k1, (in_channels, dec_channels), jnp.float32))
        bdec.append(0.01 * jax.random.normal(k2, (dec_channels,), jnp.float32))
        whead.append(0.1 * jax.random.normal(k3, (dec_channels, cout), jnp.float32))
        bhead.append(0.01 * jax.random.normal(k4, (cout,), jnp.float32))

    # 4 stand-in decoders stacked along the feature axis; 4x4 avg-pool folded
    # into the 1x1-conv weights (im2col contraction K = in_channels * 16).
    wdec_all = jnp.concatenate(wdec, axis=1)                    # [Cin, 4*dec]
    wd = jnp.repeat(wdec_all.T, 16, axis=1) / 16.0              # [4*dec, Cin*16]
    bd = jnp.concatenate(bdec, axis=0).reshape(-1, 1)           # [4*dec, 1]

    # Block-diagonal head weights: head h only reads its own decoder features.
    wh = np.zeros((chp, n_heads * dec_channels), np.float32)
    bh = np.zeros((chp,), np.float32)
    col = 0
    for h, name in enumerate(HEAD_ORDER):
        cout = widths[name]
        wh[col:col + cout, h * dec_channels:(h + 1) * dec_channels] = np.asarray(whead[h]).T
        bh[col:col + cout] = np.asarray(bhead[h])
        col += cout

    return {"wd": wd.astype(jnp.bfloat16),
            "bd": bd.astype(jnp.float32),
            "wh": jnp.asarray(wh, jnp.bfloat16),
            "bh": jnp.asarray(bh, jnp.float32).reshape(-1, 1)}


# ---------------------------------------------------------------------------
# Forward pass
# ---------------------------------------------------------------------------
def pose_regressor_forward(x, params, classes=2):
    n, c_in, h, w = x.shape
    hd, wd_ = h // 4, w // 4
    hdwd, hw = hd * wd_, h * w
    widths = _head_widths(classes)
    c12 = sum(widths[nm] for nm in HEAD_ORDER)

    # ---- encoder + 4 FPN decoders stand-in, fused with all four 1x1 heads ---
    # TODO(synk): smp encoder / FPN decoders are external library modules; the
    # stand-in is 4x4 avg-pool (folded into the matmul) -> 1x1 conv -> ReLU.
    tp = min(1024, _round_up(hdwd, 128))
    hdwdp = _round_up(hdwd, tp)
    patches = x.reshape(n, c_in, hd, 4, wd_, 4).transpose(0, 1, 3, 5, 2, 4)
    patches = patches.reshape(n, c_in * 16, hdwd)
    if hdwdp != hdwd:
        patches = jnp.pad(patches, ((0, 0), (0, 0), (0, hdwdp - hdwd)))
    patches = patches.astype(jnp.bfloat16)

    low = fused_decoders_and_heads(patches, params["wd"], params["bd"],
                                   params["wh"], params["bh"], tp)
    # low: [N, CHP, HdWdp]; channel order mask | rotation | translation | scales

    # ---- UpsamplingBilinear2d(scale_factor=4, align_corners=True), all heads
    # at once, single matmul against the precomputed kron(Ah, Aw) operator. ---
    hwp = _round_up(hw, 128)
    a2dt = _kron_upsample_operator(hd, wd_, hdwdp, hwp)          # [HdWdp, HWp]
    r = n * c12
    rp = _round_up(r, 8)
    low_rows = low[:, :c12, :].reshape(r, hdwdp)
    if rp != r:
        low_rows = jnp.pad(low_rows, ((0, rp - r), (0, 0)))
    up = bilinear_upsample4_all(low_rows, a2dt)                  # [Rp, HWp]

    all_logits = up[:r, :hw].reshape(n, c12, h, w)
    o1 = classes
    o2 = o1 + widths["rotation"]
    o3 = o2 + widths["translation"]
    mask_logits = all_logits[:, :o1]
    quat_logits = all_logits[:, o1:o2]
    xyz_logits = all_logits[:, o2:o3]
    scales_logits = all_logits[:, o3:c12]

    # xy / z channel split (verbatim index computation from the module)
    xy_index = np.array([i for i in range(xyz_logits.shape[1]) if i % 3 != 0]) - 1
    z_index = np.array([i for i in range(xyz_logits.shape[1]) if i % 3 == 0]) + 2
    xy_logits = xyz_logits[:, xy_index, :, :]
    z_logits = xyz_logits[:, z_index, :, :]

    logits = {"quaternion": quat_logits, "scales": scales_logits,
              "xy": xy_logits, "z": z_logits}

    # cat_mask = argmax(LogSoftmax(mask_logits, dim=1), dim=1).  log_softmax is
    # monotone per pixel, so argmax is taken directly (int32 vs torch's int64).
    mask_rows = up[:r].reshape(n, c12, hwp)[:, :classes, :]      # [N, classes, HWp]
    cat_mask = channel_argmax(mask_rows)[:, 0, :hw].reshape(n, h, w)

    # TODO(synk): gtf.class_compress2 / AggregationLayer / HoughVotingLayer /
    # gtf.samplewise_get_RT have no provided source; uncompressed logits are
    # returned and agg_pred is None.
    cc_logits = logits
    agg_pred = None

    return {"mask": mask_logits, **cc_logits,
            "auxilary": {"cat_mask": cat_mask, "agg_pred": agg_pred}}


# ---------------------------------------------------------------------------
if __name__ == "__main__":
    key = jax.random.PRNGKey(0)
    kx, kp = jax.random.split(key)

    N, Cin, H, W = 2, 3, 16, 16
    classes = 2
    x = jax.random.normal(kx, (N, Cin, H, W), jnp.float32)

    # intrinsics / inverse kept for fidelity (only consumed by the TODO RT stage)
    intrinsics = jnp.array([[600.0, 0.0, 320.0],
                            [0.0, 600.0, 240.0],
                            [0.0, 0.0, 1.0]], jnp.float32)
    inv_intrinsics = jnp.linalg.inv(intrinsics)

    params = init_params(kp, in_channels=Cin, classes=classes)
    fwd = jax.jit(functools.partial(pose_regressor_forward, classes=classes))
    out = fwd(x, params)

    for leaf in jax.tree_util.tree_leaves(out):
        jax.block_until_ready(leaf)
    jax.block_until_ready(inv_intrinsics)

    # sanity on shapes
    assert out["mask"].shape == (N, classes, H, W)
    assert out["quaternion"].shape == (N, 4 * (classes - 1), H, W)
    assert out["xy"].shape == (N, 2 * (classes - 1), H, W)
    assert out["z"].shape == (N, 1 * (classes - 1), H, W)
    assert out["scales"].shape == (N, 3 * (classes - 1), H, W)
    assert out["auxilary"]["cat_mask"].shape == (N, H, W)
    assert out["auxilary"]["cat_mask"].dtype == jnp.int32

    print("KERNEL_OK")
</pallas_src>

<mosaic_0001>
module attributes {stable_mosaic.version = 11 : i64} {
  func.func @_upsample_kernel(%arg0: i32, %arg1: i32, %arg2: memref<8x128xf32, #tpu.memory_space<vmem>>, %arg3: memref<128x256xf32, #tpu.memory_space<vmem>>, %arg4: memref<8x256xf32, #tpu.memory_space<vmem>>) attributes {dimension_semantics = [#tpu.dimension_semantics<parallel>, #tpu.dimension_semantics<parallel>], iteration_bounds = array<i64: 3, 1>, scalar_prefetch = 0 : i64, scratch_operands = 0 : i64, tpu.core_type = #tpu.core_type<tc>, window_params = [{transform_indices = @transform_0, window_bounds = array<i64: 8, 128>}, {transform_indices = @transform_1, window_bounds = array<i64: 128, 256>}, {transform_indices = @transform_2, window_bounds = array<i64: 8, 256>}]} {
    %c0 = arith.constant 0 : index
    %c0_0 = arith.constant 0 : index
    %0 = vector.load %arg2[%c0, %c0_0] : memref<8x128xf32, #tpu.memory_space<vmem>>, vector<8x128xf32>
    %c0_1 = arith.constant 0 : index
    %c0_2 = arith.constant 0 : index
    %1 = vector.load %arg3[%c0_1, %c0_2] : memref<128x256xf32, #tpu.memory_space<vmem>>, vector<128x256xf32>
    %cst = arith.constant dense<0.000000e+00> : vector<8x256xf32>
    %2 = tpu.matmul %0, %1, %cst {dimension_numbers = #tpu.dot_dimension_numbers<[1], [0], [0], [1], [0, 0, 1, 1], [], []>} : vector<8x128xf32>, vector<128x256xf32>, vector<8x256xf32> -> vector<8x256xf32>
    %c0_3 = arith.constant 0 : index
    %c0_4 = arith.constant 0 : index
    %3 = vector.load %arg4[%c0_3, %c0_4] : memref<8x256xf32, #tpu.memory_space<vmem>>, vector<8x256xf32>
    tpu.vector_store %arg4[%c0_3, %c0_4], %2 {strides = array<i32>} : memref<8x256xf32, #tpu.memory_space<vmem>>, vector<8x256xf32>,
    return
  }
  func.func @transform_0(%arg0: i32, %arg1: i32) -> (i32, i32) {
    %c0_i32 = arith.constant 0 : i32
    %c0_i32_0 = arith.constant 0 : i32
    return %arg0, %c0_i32 : i32, i32
  }
  func.func @transform_1(%arg0: i32, %arg1: i32) -> (i32, i32) {
    %c0_i32 = arith.constant 0 : i32
    %c0_i32_0 = arith.constant 0 : i32
    return %c0_i32, %arg1 : i32, i32
  }
  func.func @transform_2(%arg0: i32, %arg1: i32) -> (i32, i32) {
    %c0_i32 = arith.constant 0 : i32
    return %arg0, %arg1 : i32, i32
  }
}

module attributes {stable_mosaic.version = 11 : i64} {
  func.func @_fused_heads_kernel(%arg0: i32, %arg1: i32, %arg2: memref<1x48x128xbf16, #tpu.memory_space<vmem>>, %arg3: memref<512x48xbf16, #tpu.memory_space<vmem>>, %arg4: memref<512x1xf32, #tpu.memory_space<vmem>>, %arg5: memref<16x512xbf16, #tpu.memory_space<vmem>>, %arg6: memref<16x1xf32, #tpu.memory_space<vmem>>, %arg7: memref<1x16x128xf32, #tpu.memory_space<vmem>>) attributes {dimension_semantics = [#tpu.dimension_semantics<parallel>, #tpu.dimension_semantics<parallel>], iteration_bounds = array<i64: 2, 1>, scalar_prefetch = 0 : i64, scratch_operands = 0 : i64, tpu.core_type = #tpu.core_type<tc>, window_params = [{transform_indices = @transform_0, window_bounds = array<i64: 1, 48, 128>}, {pipeline_mode = #tpu.pipeline_mode<synchronous>, transform_indices = @transform_1, window_bounds = array<i64: 512, 48>}, {pipeline_mode = #tpu.pipeline_mode<synchronous>, transform_indices = @transform_2, window_bounds = array<i64: 512, 1>}, {pipeline_mode = #tpu.pipeline_mode<synchronous>, transform_indices = @transform_3, window_bounds = array<i64: 16, 512>}, {pipeline_mode = #tpu.pipeline_mode<synchronous>, transform_indices = @transform_4, window_bounds = array<i64: 16, 1>}, {transform_indices = @transform_5, window_bounds = array<i64: 1, 16, 128>}]} {
    %c0 = arith.constant 0 : index
    %c0_0 = arith.constant 0 : index
    %c0_1 = arith.constant 0 : index
    %0 = vector.load %arg2[%c0, %c0_0, %c0_1] : memref<1x48x128xbf16, #tpu.memory_space<vmem>>, vector<1x48x128xbf16>
    %1 = vector.shape_cast %0 : vector<1x48x128xbf16> to vector<48x128xbf16>
    %c0_2 = arith.constant 0 : index
    %c0_3 = arith.constant 0 : index
    %2 = vector.load %arg3[%c0_2, %c0_3] : memref<512x48xbf16, #tpu.memory_space<vmem>>, vector<512x48xbf16>
    %cst = arith.constant dense<0.000000e+00> : vector<512x128xf32>
    %3 = tpu.matmul %2, %1, %cst {dimension_numbers = #tpu.dot_dimension_numbers<[1], [0], [0], [1], [0, 0, 1, 1], [], []>} : vector<512x48xbf16>, vector<48x128xbf16>, vector<512x128xf32> -> vector<512x128xf32>
    %c0_4 = arith.constant 0 : index
    %c0_5 = arith.constant 0 : index
    %4 = vector.load %arg4[%c0_4, %c0_5] : memref<512x1xf32, #tpu.memory_space<vmem>>, vector<512x1xf32>
    %5 = vector.broadcast %4 : vector<512x1xf32> to vector<512x128xf32>
    %6 = arith.addf %3, %5 : vector<512x128xf32>
    %cst_6 = arith.constant 0.000000e+00 : f32
    %7 = vector.broadcast %cst_6 : f32 to vector<512x128xf32>
    %8 = arith.maximumf %6, %7 : vector<512x128xf32>
    %c0_7 = arith.constant 0 : index
    %c0_8 = arith.constant 0 : index
    %9 = vector.load %arg5[%c0_7, %c0_8] : memref<16x512xbf16, #tpu.memory_space<vmem>>, vector<16x512xbf16>
    %10 = arith.truncf %8 : vector<512x128xf32> to vector<512x128xbf16>
    %cst_9 = arith.constant dense<0.000000e+00> : vector<16x128xf32>
    %11 = tpu.matmul %9, %10, %cst_9 {dimension_numbers = #tpu.dot_dimension_numbers<[1], [0], [0], [1], [0, 0, 1, 1], [], []>} : vector<16x512xbf16>, vector<512x128xbf16>, vector<16x128xf32> -> vector<16x128xf32>
    %c0_10 = arith.constant 0 : index
    %c0_11 = arith.constant 0 : index
    %12 = vector.load %arg6[%c0_10, %c0_11] : memref<16x1xf32, #tpu.memory_space<vmem>>, vector<16x1xf32>
    %13 = vector.broadcast %12 : vector<16x1xf32> to vector<16x128xf32>
    %14 = arith.addf %11, %13 : vector<16x128xf32>
    %c0_12 = arith.constant 0 : index
    %c0_13 = arith.constant 0 : index
    %c0_14 = arith.constant 0 : index
    %15 = vector.load %arg7[%c0_12, %c0_13, %c0_14] : memref<1x16x128xf32, #tpu.memory_space<vmem>>, vector<1x16x128xf32>
    %16 = vector.shape_cast %15 : vector<1x16x128xf32> to vector<16x128xf32>
    %17 = vector.shape_cast %14 : vector<16x128xf32> to vector<1x16x128xf32>
    tpu.vector_store %arg7[%c0_12, %c0_13, %c0_14], %17 {strides = array<i32>} : memref<1x16x128xf32, #tpu.memory_space<vmem>>, vector<1x16x128xf32>,
    return
  }
  func.func @transform_0(%arg0: i32, %arg1: i32) -> (i32, i32, i32) {
    %c0_i32 = arith.constant 0 : i32
    %c0_i32_0 = arith.constant 0 : i32
    return %arg0, %c0_i32, %arg1 : i32, i32, i32
  }
  func.func @transform_1(%arg0: i32, %arg1: i32) -> (i32, i32) {
    %c0_i32 = arith.constant 0 : i32
    %c0_i32_0 = arith.constant 0 : i32
    %c0_i32_1 = arith.constant 0 : i32
    return %c0_i32, %c0_i32_0 : i32, i32
  }
  func.func @transform_2(%arg0: i32, %arg1: i32) -> (i32, i32) {
    %c0_i32 = arith.constant 0 : i32
    %c0_i32_0 = arith.constant 0 : i32
    %c0_i32_1 = arith.constant 0 : i32
    return %c0_i32, %c0_i32_0 : i32, i32
  }
  func.func @transform_3(%arg0: i32, %arg1: i32) -> (i32, i32) {
    %c0_i32 = arith.constant 0 : i32
    %c0_i32_0 = arith.constant 0 : i32
    %c0_i32_1 = arith.constant 0 : i32
    return %c0_i32, %c0_i32_0 : i32, i32
  }
  func.func @transform_4(%arg0: i32, %arg1: i32) -> (i32, i32) {
    %c0_i32 = arith.constant 0 : i32
    %c0_i32_0 = arith.constant 0 : i32
    %c0_i32_1 = arith.constant 0 : i32
    return %c0_i32, %c0_i32_0 : i32, i32
  }
  func.func @transform_5(%arg0: i32, %arg1: i32) -> (i32, i32, i32) {
    %c0_i32 = arith.constant 0 : i32
    %c0_i32_0 = arith.constant 0 : i32
    return %arg0, %c0_i32, %arg1 : i32, i32, i32
  }
}

module attributes {stable_mosaic.version = 11 : i64} {
  func.func @_channel_argmax_kernel(%arg0: i32, %arg1: i32, %arg2: memref<1x2x256xf32, #tpu.memory_space<vmem>>, %arg3: memref<1x1x256xi32, #tpu.memory_space<vmem>>) attributes {dimension_semantics = [#tpu.dimension_semantics<parallel>, #tpu.dimension_semantics<parallel>], iteration_bounds = array<i64: 2, 1>, scalar_prefetch = 0 : i64, scratch_operands = 0 : i64, tpu.core_type = #tpu.core_type<tc>, window_params = [{transform_indices = @transform_0, window_bounds = array<i64: 1, 2, 256>}, {transform_indices = @transform_1, window_bounds = array<i64: 1, 1, 256>}]} {
    %c0 = arith.constant 0 : index
    %c0_0 = arith.constant 0 : index
    %c0_1 = arith.constant 0 : index
    %0 = vector.load %arg2[%c0, %c0_0, %c0_1] : memref<1x2x256xf32, #tpu.memory_space<vmem>>, vector<1x2x256xf32>
    %cst = arith.constant dense<0xFF800000> : vector<1x256xf32>
    %1 = vector.multi_reduction <maximumf>, %0, %cst [1] : vector<1x2x256xf32> to vector<1x256xf32>
    %2 = vector.shape_cast %1 : vector<1x256xf32> to vector<1x1x256xf32>
    %3 = tpu.iota {dimensions = array<i32: 1>} : vector<1x2x256xi32>
    %4 = vector.broadcast %2 : vector<1x1x256xf32> to vector<1x2x256xf32>
    %5 = arith.cmpf oeq, %0, %4 : vector<1x2x256xf32>
    %c2_i32 = arith.constant 2 : i32
    %6 = vector.broadcast %c2_i32 : i32 to vector<1x2x256xi32>
    %7 = arith.select %5, %3, %6 : vector<1x2x256xi1>, vector<1x2x256xi32>
    %cst_2 = arith.constant dense<2147483647> : vector<1x256xi32>
    %8 = vector.multi_reduction <minsi>, %7, %cst_2 [1] : vector<1x2x256xi32> to vector<1x256xi32>
    %9 = vector.shape_cast %8 : vector<1x256xi32> to vector<1x1x256xi32>
    %c0_3 = arith.constant 0 : index
    %c0_4 = arith.constant 0 : index
    %c0_5 = arith.constant 0 : index
    %10 = vector.load %arg3[%c0_3, %c0_4, %c0_5] : memref<1x1x256xi32, #tpu.memory_space<vmem>>, vector<1x1x256xi32>
    tpu.vector_store %arg3[%c0_3, %c0_4, %c0_5], %9 {strides = array<i32>} : memref<1x1x256xi32, #tpu.memory_space<vmem>>, vector<1x1x256xi32>,
    return
  }
  func.func @transform_0(%arg0: i32, %arg1: i32) -> (i32, i32, i32) {
    %c0_i32 = arith.constant 0 : i32
    %c0_i32_0 = arith.constant 0 : i32
    return %arg0, %c0_i32, %arg1 : i32, i32, i32
  }
  func.func @transform_1(%arg0: i32, %arg1: i32) -> (i32, i32, i32) {
    %c0_i32 = arith.constant 0 : i32
    %c0_i32_0 = arith.constant 0 : i32
    return %arg0, %c0_i32, %arg1 : i32, i32, i32
  }
}

</mosaic_0001>

<llo_original>
// kernel: squeeze.1
$region0: #{squeeze.1}
  %s0 = inlined_call_operand.vmem [shape: s32[2,256], index: 0, kind: input, shape index: {}]
  %s1 = inlined_call_operand.hbm [shape: s32[2,16,16], index: 1, kind: output, shape index: {}]
  $region1: #{squeeze.1} parent=0
    #allocation0 [shape = 'u8[16384]{0}', space=vmem, size = 0x4000, scoped, tag = 'operand span for operand 1']
    #allocation1 [shape = 's32[1]{0}', space=sflag, size = 0x4, scoped, tag = 'scoped memory for squeeze.1']
    #allocation2 [shape = 'u8[8192]{0}', space=vmem, size = 0x2000, scoped, tag = 'scoped mem for input reshape']
    %2 = vsyncpa [#allocation1], 0
    %s4 = ssub.s32 4, 1
    %s5 = scalar_lea.vmem %s0, 2
    %v6 = vld [vmem:[%s5] sm:%s4]
    %s7 = scalar_lea.vmem [#allocation2], 8
    %8 = vst [vmem:[%s7] sm:%s4] %v6
    %v9 = vld [vmem:[%s0] sm:%s4]
    %10 = vst [vmem:[#allocation2] sm:%s4] %v9
    %v11 = vld [vmem:[#allocation2] sm:$0x3]
    %vm12 = vcmask 130048
    %13 = vst.msk [vmem:[#allocation0] ss:$16 sm:$0x3] %vm12, %v11
    %s14 = scalar_lea.vmem [#allocation2], 8
    %v15 = vld [vmem:[%s14] sm:$0x3]
    %vm16 = vcmask 130048
    %s17 = scalar_lea.vmem [#allocation0], 8
    %18 = vst.msk [vmem:[%s17] ss:$16 sm:$0x3] %vm16, %v15
    %v19 = vld.sshfl [vmem:[#allocation2] sm:$0xff pattern:$0x99999180]
    %20 = vrot.lane.b32.xlu0 %v19, 112
    %v21 = vpop.permute.xlu0 %20
    %vm22 = vcmask 130048
    %s23 = scalar_lea.vmem [#allocation0], 1
    %24 = vst.msk [vmem:[%s23] ss:$8 sm:$0xf] %vm22, %v21
    %v25 = vld.sshfl [vmem:[#allocation2] sm:$0xff pattern:$0x99999180]
    %26 = vrot.lane.b32.xlu0 %v25, 96
    %v27 = vpop.permute.xlu0 %26
    %vm28 = vcmask 130048
    %s29 = scalar_lea.vmem [#allocation0], 2
    %30 = vst.msk [vmem:[%s29] ss:$8 sm:$0xf] %vm28, %v27
    %v31 = vld.sshfl [vmem:[#allocation2] sm:$0xff pattern:$0x99999180]
    %32 = vrot.lane.b32.xlu0 %v31, 80
    %v33 = vpop.permute.xlu0 %32
    %vm34 = vcmask 130048
    %s35 = scalar_lea.vmem [#allocation0], 3
    %36 = vst.msk [vmem:[%s35] ss:$8 sm:$0xf] %vm34, %v33
    %v37 = vld.sshfl [vmem:[#allocation2] sm:$0xff pattern:$0x99999180]
    %38 = vrot.lane.b32.xlu0 %v37, 64
    %v39 = vpop.permute.xlu0 %38
    %vm40 = vcmask 130048
    %s41 = scalar_lea.vmem [#allocation0], 4
    %42 = vst.msk [vmem:[%s41] ss:$8 sm:$0xf] %vm40, %v39
    %v43 = vld.sshfl [vmem:[#allocation2] sm:$0xff pattern:$0x99999180]
    %44 = vrot.lane.b32.xlu0 %v43, 48
    %v45 = vpop.permute.xlu0 %44
    %vm46 = vcmask 130048
    %s47 = scalar_lea.vmem [#allocation0], 5
    %48 = vst.msk [vmem:[%s47] ss:$8 sm:$0xf] %vm46, %v45
    %v49 = vld.sshfl [vmem:[#allocation2] sm:$0xff pattern:$0x99999180]
    %50 = vrot.lane.b32.xlu0 %v49, 32
    %v51 = vpop.permute.xlu0 %50
    %vm52 = vcmask 130048
    %s53 = scalar_lea.vmem [#allocation0], 6
    %54 = vst.msk [vmem:[%s53] ss:$8 sm:$0xf] %vm52, %v51
    %v55 = vld.sshfl [vmem:[#allocation2] sm:$0xff pattern:$0x99999180]
    %56 = vrot.lane.b32.xlu0 %v55, 16
    %v57 = vpop.permute.xlu0 %56
    %vm58 = vcmask 130048
    %s59 = scalar_lea.vmem [#allocation0], 7
    %60 = vst.msk [vmem:[%s59] ss:$8 sm:$0xf] %vm58, %v57
    %62 = vsyncadd [#allocation1], 0
    %s64 = sshll.u32 [#allocation0], 4
    %s65 = int_to_ptr.vmem [resolvable:$true] %s64
    %s66 = sshll.u32 %s1, 4
    %s67 = int_to_ptr.hbm [resolvable:$true] %s66
    %69 = dma.vmem_to_hbm [thread:$0]  %s65, 512, %s67, [#allocation1]
    %71 = dma.done [#allocation1], 512
    %72 = vsyncpa [#allocation1], 1

// kernel: pose_regressor_forward.4
$region0: #{pose_regressor_forward.4}
  #allocation0 [shape = 'u32[]', space=smem, size = 0x4, offset = 0x4, fixed_abs, tag = 'smem constant byte address 0x4 - core index']
  #allocation1 [shape = 'u32[72,128]{1,0:T(1,128)}', space=vmem, size = 0x9000, scoped, tag = 'internal scratch']
  %s0 = inlined_call_operand.vmem [shape: f32[24,128], index: 0, kind: input, shape index: {}]
  %s1 = inlined_call_operand.vmem [shape: f32[128,256], index: 1, kind: input, shape index: {}]
  %s2 = inlined_call_operand.vmem [shape: f32[24,256], index: 2, kind: output, shape index: {}]
  %s3 = sld [smem:[#allocation0]]
  $region41: #{pose_regressor_forward.4} parent=0
    _
  %s5 = ssub.s32 1, %s3
  %s6 = scalar_select 0, %s5, %s3
  loop: start=0, step=1, limit=5
  $region2: #{pose_regressor_forward.4} parent=0 // loop_pre_header
    _
  $region3: #{pose_regressor_forward.4} parent=0 // loop_header
    %s8 = sphi 0, %s12
    %p9 = scmp.ge.s32.totalorder %s8, 5
    %s15 = sphi 0, %s27
    %s16 = sphi 0, %s23
    %s17 = sphi 0, %s15
    %s18 = sphi 0, %s16
    %s19 = sphi 0, %s17
    %s20 = sphi 0, %s18
    %s30 = sphi 0, %s32
    %s33 = sphi 0, %s30
    %s34 = sphi 0, %s33
    %s50 = sphi 0, %s34
    %s56 = sphi 0, %s58
    %s59 = sphi 0, %s56
    %s60 = sphi 0, %s59
    %s76 = sphi 0, %s60
    %s84 = sphi 0, %s86
    %s87 = sphi 0, %s84
    %s88 = sphi 0, %s87
    %s104 = sphi 0, %s88
  $region4: #{pose_regressor_forward.4} parent=0 // loop_header_branch
    %11 = sbr.rel (%p9) target = $region8
  $region5: #{pose_regressor_forward.4} parent=0 // loop_body
    %s13 = ssub.s32 %s8, 1
    %s14 = ssub.s32 %s8, 2
    %s21 = sadd.s32 1, %s16
    %p22 = scmp.ge.s32.totalorder %s21, 1
    %s23 = scalar_select %p22, 0, %s21
    %s24 = sadd.s32 1, %s15
    %s25 = scalar_select %p22, %s24, %s15
    %p26 = scmp.ge.s32.totalorder %s25, 3
    %s27 = scalar_select %p26, 0, %s25
    %s28 = ssub.s32 %s15, %s27
    %p29 = scmp.eq.s32.totalorder %s28, 0
    %s31 = sadd.s32 %s30, 1
    %s32 = scalar_select %p29, %s30, %s31
    %p35 = pneg %p29
    %p36 = scmp.eq.s32.totalorder %s8, 2
    %p37 = por %p35, %p36
    %p38 = scmp.ne.s32.totalorder %s30, %s33
    %p39 = scmp.eq.s32.totalorder %s8, 0
    %p40 = por %p38, %p39
    %p41 = scmp.ne.s32.totalorder %s30, %s33
    %p42 = scmp.eq.s32.totalorder %s13, 2
    %p43 = por %p41, %p42
    %p44 = scmp.ne.s32.totalorder %s33, %s34
    %p45 = scmp.eq.s32.totalorder %s13, 0
    %p46 = por %p44, %p45
    %p47 = scmp.ne.s32.totalorder %s33, %s34
    %p48 = scmp.eq.s32.totalorder %s14, 2
    %p49 = por %p47, %p48
    %p51 = scmp.ne.s32.totalorder %s34, %s50
    %p52 = scmp.eq.s32.totalorder %s14, 0
    %p53 = por %p51, %p52
    %s54 = ssub.s32 %s16, %s23
    %p55 = scmp.eq.s32.totalorder %s54, 0
    %s57 = sadd.s32 %s56, 1
    %s58 = scalar_select %p55, %s56, %s57
    %p61 = pneg %p55
    %p62 = scmp.eq.s32.totalorder %s8, 2
    %p63 = por %p61, %p62
    %p64 = scmp.ne.s32.totalorder %s56, %s59
    %p65 = scmp.eq.s32.totalorder %s8, 0
    %p66 = por %p64, %p65
    %p67 = scmp.ne.s32.totalorder %s56, %s59
    %p68 = scmp.eq.s32.totalorder %s13, 2
    %p69 = por %p67, %p68
    %p70 = scmp.ne.s32.totalorder %s59, %s60
    %p71 = scmp.eq.s32.totalorder %s13, 0
    %p72 = por %p70, %p71
    %p73 = scmp.ne.s32.totalorder %s59, %s60
    %p74 = scmp.eq.s32.totalorder %s14, 2
    %p75 = por %p73, %p74
    %p77 = scmp.ne.s32.totalorder %s60, %s76
    %p78 = scmp.eq.s32.totalorder %s14, 0
    %p79 = por %p77, %p78
    %s80 = ssub.s32 %s15, %s27
    %s81 = ssub.s32 %s16, %s23
    %s82 = sor.u32 %s80, %s81
    %p83 = scmp.eq.s32.totalorder %s82, 0
    %s85 = sadd.s32 %s84, 1
    %s86 = scalar_select %p83, %s84, %s85
    %p89 = pneg %p83
    %p90 = scmp.eq.s32.totalorder %s8, 2
    %p91 = por %p89, %p90
    %p92 = scmp.ne.s32.totalorder %s84, %s87
    %p93 = scmp.eq.s32.totalorder %s8, 0
    %p94 = por %p92, %p93
    %p95 = scmp.ne.s32.totalorder %s84, %s87
    %p96 = scmp.eq.s32.totalorder %s13, 2
    %p97 = por %p95, %p96
    %p98 = scmp.ne.s32.totalorder %s87, %s88
    %p99 = scmp.eq.s32.totalorder %s13, 0
    %p100 = por %p98, %p99
    %p101 = scmp.ne.s32.totalorder %s87, %s88
    %p102 = scmp.eq.s32.totalorder %s14, 2
    %p103 = por %p101, %p102
    %p105 = scmp.ne.s32.totalorder %s88, %s104
    %p106 = scmp.eq.s32.totalorder %s14, 0
    %p107 = por %p105, %p106
    %p108 = scmp.le.s32.totalorder 1, %s8
    %p109 = scmp.lt.s32.totalorder %s8, 4
    %p110 = pnand %p108, %p109
    %p111 = pneg %p110
    // Predicated region
    $region9: #{pose_regressor_forward.4} parent=5 // pred_check
      _
    $region10: #{pose_regressor_forward.4} parent=5 // pred_check_branch
      %113 = sbr.rel (%p110) target = $region12
    $region11: #{pose_regressor_forward.4} parent=5 // pred_region
      %s114 = ssub.s32 %s8, 1
      // Predicated region
      $region13: #{pose_regressor_forward.4} parent=11 // pred_check
        %p115 = pneg %p72
      $region14: #{pose_regressor_forward.4} parent=11 // pred_check_branch
        %117 = sbr.rel (%p115) target = $region16
      $region15: #{pose_regressor_forward.4} parent=11 // pred_region
        %s118 = smul.u32 2, %s18
        %p119 = scmp.lt.s32.totalorder %s118, 1
        %s120 = scalar_select %p119, %s118, 1
        %s121 = smul.addr %s120, 8
        %s122 = scalar_lea.vmem %s1, %s121
        %s123 = smul.u32 2, %s18
      $region16: #{pose_regressor_forward.4} parent=11 // pred_fallthru
        _
    $region12: #{pose_regressor_forward.4} parent=5 // pred_fallthru
      _
    %p124 = scmp.lt.s32.totalorder %s8, 3
    // Predicated region
    $region17: #{pose_regressor_forward.4} parent=5 // pred_check
      %p125 = pneg %p124
    $region18: #{pose_regressor_forward.4} parent=5 // pred_check_branch
      %127 = sbr.rel (%p125) target = $region20
    $region19: #{pose_regressor_forward.4} parent=5 // pred_region
      // Predicated region
      $region21: #{pose_regressor_forward.4} parent=19 // pred_check
        %p128 = pneg %p40
      $region22: #{pose_regressor_forward.4} parent=19 // pred_check_branch
        %130 = sbr.rel (%p128) target = $region24
      $region23: #{pose_regressor_forward.4} parent=19 // pred_region
        %p131 = scmp.lt.s32.totalorder %s15, 2
        %s132 = scalar_select %p131, %s15, 2
        %s133 = smul.addr %s132, 8
        %s134 = scalar_lea.vmem %s0, %s133
      $region24: #{pose_regressor_forward.4} parent=19 // pred_fallthru
        _
    $region20: #{pose_regressor_forward.4} parent=5 // pred_fallthru
      _
    %p135 = scmp.le.s32.totalorder 1, %s8
    %p136 = scmp.lt.s32.totalorder %s8, 4
    %p137 = pnand %p135, %p136
    %p138 = pneg %p137
    // Predicated region
    $region25: #{pose_regressor_forward.4} parent=5 // pred_check
      _
    $region26: #{pose_regressor_forward.4} parent=5 // pred_check_branch
      %140 = sbr.rel (%p137) target = $region28
    $region27: #{pose_regressor_forward.4} parent=5 // pred_region
      %s141 = ssub.s32 %s8, 1
      %p142 = scmp.lt.s32.totalorder %s17, 2
      %s143 = scalar_select %p142, %s17, 2
      %s144 = smul.addr %s143, 8
      %s145 = scalar_lea.vmem %s0, %s144
      %p146 = pneg %p46
      %p147 = pneg %p43
      %s148 = smul.u32 2, %s18
      %p149 = scmp.lt.s32.totalorder %s148, 1
      %s150 = scalar_select %p149, %s148, 1
      %s151 = smul.addr %s150, 8
      %s152 = scalar_lea.vmem %s1, %s151
      %p153 = pneg %p72
      %p154 = pneg %p69
      %p155 = pneg %p100
      %p156 = pneg %p97
      %s157 = smul.u32 2, %s18
      %p158 = scmp.lt.s32.totalorder %s17, 2
      %s159 = scalar_select %p158, %s17, 2
      %p160 = scmp.lt.s32.totalorder %s157, 1
      %s161 = scalar_select %p160, %s157, 1
      %s162 = smul.addr %s159, 2
      %s163 = sadd.s32 %s161, %s162
      %s164 = smul.addr %s163, 8
      %s165 = scalar_lea.vmem %s2, %s164
      %p166 = scmp.lt.s32.totalorder %s17, 2
      %s167 = scalar_select %p166, %s17, 2
      %s168 = smul.addr %s167, 8
      %s169 = scalar_lea.vmem %s0, %s168
      %s170 = smul.u32 2, %s18
      %p171 = scmp.lt.s32.totalorder %s170, 1
      %s172 = scalar_select %p171, %s170, 1
      %s173 = smul.addr %s172, 8
      %s174 = scalar_lea.vmem %s1, %s173
      %s175 = smul.u32 2, %s18
      %s176 = smul.u32 2, %s18
      %p177 = scmp.lt.s32.totalorder %s17, 2
      %s178 = scalar_select %p177, %s17, 2
      %p179 = scmp.lt.s32.totalorder %s176, 1
      %s180 = scalar_select %p179, %s176, 1
      %s181 = smul.addr %s178, 2
      %s182 = sadd.s32 %s180, %s181
      %s183 = smul.addr %s182, 8
      %s184 = scalar_lea.vmem %s2, %s183
      %s185 = smul.u32 2, %s18
      %v186 = vld [vmem:[%s169] sm:$0xff]
      %v187 = vld [vmem:[%s174] sm:$0xff]
      %v188 = vld [vmem:[%s174 + $0x8] sm:$0xff]
      %v189 = vld [vmem:[%s174 + $0x10] sm:$0xff]
      %v190 = vld [vmem:[%s174 + $0x18] sm:$0xff]
      %v191 = vld [vmem:[%s174 + $0x20] sm:$0xff]
      %v192 = vld [vmem:[%s174 + $0x28] sm:$0xff]
      %v193 = vld [vmem:[%s174 + $0x30] sm:$0xff]
      %v194 = vld [vmem:[%s174 + $0x38] sm:$0xff]
      %v195 = vld [vmem:[%s174 + $0x40] sm:$0xff]
      %v196 = vld [vmem:[%s174 + $0x48] sm:$0xff]
      %v197 = vld [vmem:[%s174 + $0x50] sm:$0xff]
      %v198 = vld [vmem:[%s174 + $0x58] sm:$0xff]
      %v199 = vld [vmem:[%s174 + $0x60] sm:$0xff]
      %v200 = vld [vmem:[%s174 + $0x68] sm:$0xff]
      %v201 = vld [vmem:[%s174 + $0x70] sm:$0xff]
      %v202 = vld [vmem:[%s174 + $0x78] sm:$0xff]
      %v203 = vld [vmem:[%s174 + $0x80] sm:$0xff]
      %v204 = vld [vmem:[%s174 + $0x88] sm:$0xff]
      %v205 = vld [vmem:[%s174 + $0x90] sm:$0xff]
      %v206 = vld [vmem:[%s174 + $0x98] sm:$0xff]
      %v207 = vld [vmem:[%s174 + $0xa0] sm:$0xff]
      %v208 = vld [vmem:[%s174 + $0xa8] sm:$0xff]
      %v209 = vld [vmem:[%s174 + $0xb0] sm:$0xff]
      %v210 = vld [vmem:[%s174 + $0xb8] sm:$0xff]
      %v211 = vld [vmem:[%s174 + $0xc0] sm:$0xff]
      %v212 = vld [vmem:[%s174 + $0xc8] sm:$0xff]
      %v213 = vld [vmem:[%s174 + $0xd0] sm:$0xff]
      %v214 = vld [vmem:[%s174 + $0xd8] sm:$0xff]
      %v215 = vld [vmem:[%s174 + $0xe0] sm:$0xff]
      %v216 = vld [vmem:[%s174 + $0xe8] sm:$0xff]
      %v217 = vld [vmem:[%s174 + $0xf0] sm:$0xff]
      %v218 = vld [vmem:[%s174 + $0xf8] sm:$0xff]
      %219 = vmatpush.msra.mxu0 %v217
      %220 = vmatpush.msra.mxu0 %v215
      %221 = vmatpush.msra.mxu0 %v213
      %222 = vmatpush.msra.mxu0 %v211
      %223 = vmatpush.msra.mxu0 %v209
      %224 = vmatpush.msra.mxu0 %v207
      %225 = vmatpush.msra.mxu0 %v205
      %226 = vmatpush.msra.mxu0 %v203
      %227 = vmatpush.msra.mxu0 %v201
      %228 = vmatpush.msra.mxu0 %v199
      %229 = vmatpush.msra.mxu0 %v197
      %230 = vmatpush.msra.mxu0 %v195
      %231 = vmatpush.msra.mxu0 %v193
      %232 = vmatpush.msra.mxu0 %v191
      %233 = vmatpush.msra.mxu0 %v189
      %234 = vmatpush.msra.mxu0 %v187
      %235 = vmatmul.f32.gmra.mxu0 %v186
      %v236 = vpop.f32.mrf.mxu0
      %v237 = vadd.f32 0.0, %v236
      %238 = vdwg.mxu0
      %239 = vmatpush.msra.mxu0 %v218
      %240 = vmatpush.msra.mxu0 %v216
      %241 = vmatpush.msra.mxu0 %v214
      %242 = vmatpush.msra.mxu0 %v212
      %243 = vmatpush.msra.mxu0 %v210
      %244 = vmatpush.msra.mxu0 %v208
      %245 = vmatpush.msra.mxu0 %v206
      %246 = vmatpush.msra.mxu0 %v204
      %247 = vmatpush.msra.mxu0 %v202
      %248 = vmatpush.msra.mxu0 %v200
      %249 = vmatpush.msra.mxu0 %v198
      %250 = vmatpush.msra.mxu0 %v196
      %251 = vmatpush.msra.mxu0 %v194
      %252 = vmatpush.msra.mxu0 %v192
      %253 = vmatpush.msra.mxu0 %v190
      %254 = vmatpush.msra.mxu0 %v188
      %255 = vmatmul.f32.gmra.mxu0 %v186
      %v256 = vpop.f32.mrf.mxu0
      %v257 = vadd.f32 0.0, %v256
      %258 = vdwg.mxu0
      %259 = vst [vmem:[%s184] sm:$0xff] %v237
      %260 = vst [vmem:[%s184 + $0x8] sm:$0xff] %v257
      %s261 = smul.u32 2, %s18
      %p262 = scmp.lt.s32.totalorder %s17, 2
      %s263 = scalar_select %p262, %s17, 2
      %p264 = scmp.lt.s32.totalorder %s261, 1
      %s265 = scalar_select %p264, %s261, 1
      %s266 = smul.addr %s263, 2
      %s267 = sadd.s32 %s265, %s266
      %s268 = smul.addr %s267, 8
      %s269 = scalar_lea.vmem %s2, %s268
      // Predicated region
      $region29: #{pose_regressor_forward.4} parent=27 // pred_check
        %p270 = pneg %p97
      $region30: #{pose_regressor_forward.4} parent=27 // pred_check_branch
        %272 = sbr.rel (%p270) target = $region32
      $region31: #{pose_regressor_forward.4} parent=27 // pred_region
        %s273 = smul.u32 2, %s18
      $region32: #{pose_regressor_forward.4} parent=27 // pred_fallthru
        _
    $region28: #{pose_regressor_forward.4} parent=5 // pred_fallthru
      _
    %p274 = scmp.le.s32.totalorder 2, %s8
    // Predicated region
    $region33: #{pose_regressor_forward.4} parent=5 // pred_check
      %p275 = pneg %p274
    $region34: #{pose_regressor_forward.4} parent=5 // pred_check_branch
      %277 = sbr.rel (%p275) target = $region36
    $region35: #{pose_regressor_forward.4} parent=5 // pred_region
      %s278 = ssub.s32 %s8, 2
      // Predicated region
      $region37: #{pose_regressor_forward.4} parent=35 // pred_check
        %p279 = pneg %p103
      $region38: #{pose_regressor_forward.4} parent=35 // pred_check_branch
        %281 = sbr.rel (%p279) target = $region40
      $region39: #{pose_regressor_forward.4} parent=35 // pred_region
        %s282 = smul.u32 2, %s20
        %p283 = scmp.lt.s32.totalorder %s19, 2
        %s284 = scalar_select %p283, %s19, 2
        %p285 = scmp.lt.s32.totalorder %s282, 1
        %s286 = scalar_select %p285, %s282, 1
        %s287 = smul.addr %s284, 2
        %s288 = sadd.s32 %s286, %s287
        %s289 = smul.addr %s288, 8
        %s290 = scalar_lea.vmem %s2, %s289
      $region40: #{pose_regressor_forward.4} parent=35 // pred_fallthru
        _
    $region36: #{pose_regressor_forward.4} parent=5 // pred_fallthru
      _
  $region6: #{pose_regressor_forward.4} parent=0 // loop_footer
    %s12 = sadd.s32 1, %s8
  $region7: #{pose_regressor_forward.4} parent=0 // loop_footer_branch
    %7 = sbr.rel target = $region3
  $region8: #{pose_regressor_forward.4} parent=0 // loop_exit
    _

// kernel: pose_regressor_forward.5
$region0: #{pose_regressor_forward.5}
  #allocation0 [shape = 'u32[]', space=smem, size = 0x4, offset = 0x4, fixed_abs, tag = 'smem constant byte address 0x4 - core index']
  #allocation1 [shape = 'u32[72,128]{1,0:T(1,128)}', space=vmem, size = 0x9000, scoped, tag = 'internal scratch']
  %s0 = inlined_call_operand.vmem [shape: f32[2,2,256], index: 0, kind: input, shape index: {}]
  %s1 = inlined_call_operand.vmem [shape: s32[2,1,256], index: 1, kind: output, shape index: {}]
  %s2 = sld [smem:[#allocation0]]
  $region37: #{pose_regressor_forward.5} parent=0
    _
  %s4 = ssub.s32 1, %s2
  %s5 = scalar_select 0, %s4, %s2
  loop: start=0, step=1, limit=4
  $region2: #{pose_regressor_forward.5} parent=0 // loop_pre_header
    _
  $region3: #{pose_regressor_forward.5} parent=0 // loop_header
    %s7 = sphi 0, %s11
    %p8 = scmp.ge.s32.totalorder %s7, 4
    %s14 = sphi 0, %s26
    %s15 = sphi 0, %s22
    %s16 = sphi 0, %s14
    %s17 = sphi 0, %s15
    %s18 = sphi 0, %s16
    %s19 = sphi 0, %s17
    %s31 = sphi 0, %s33
    %s34 = sphi 0, %s31
    %s35 = sphi 0, %s34
    %s51 = sphi 0, %s35
    %s59 = sphi 0, %s61
    %s62 = sphi 0, %s59
    %s63 = sphi 0, %s62
    %s79 = sphi 0, %s63
  $region4: #{pose_regressor_forward.5} parent=0 // loop_header_branch
    %10 = sbr.rel (%p8) target = $region8
  $region5: #{pose_regressor_forward.5} parent=0 // loop_body
    %s12 = ssub.s32 %s7, 1
    %s13 = ssub.s32 %s7, 2
    %s20 = sadd.s32 1, %s15
    %p21 = scmp.ge.s32.totalorder %s20, 1
    %s22 = scalar_select %p21, 0, %s20
    %s23 = sadd.s32 1, %s14
    %s24 = scalar_select %p21, %s23, %s14
    %p25 = scmp.ge.s32.totalorder %s24, 2
    %s26 = scalar_select %p25, 0, %s24
    %s27 = ssub.s32 %s14, %s26
    %s28 = ssub.s32 %s15, %s22
    %s29 = sor.u32 %s27, %s28
    %p30 = scmp.eq.s32.totalorder %s29, 0
    %s32 = sadd.s32 %s31, 1
    %s33 = scalar_select %p30, %s31, %s32
    %p36 = pneg %p30
    %p37 = scmp.eq.s32.totalorder %s7, 1
    %p38 = por %p36, %p37
    %p39 = scmp.ne.s32.totalorder %s31, %s34
    %p40 = scmp.eq.s32.totalorder %s7, 0
    %p41 = por %p39, %p40
    %p42 = scmp.ne.s32.totalorder %s31, %s34
    %p43 = scmp.eq.s32.totalorder %s12, 1
    %p44 = por %p42, %p43
    %p45 = scmp.ne.s32.totalorder %s34, %s35
    %p46 = scmp.eq.s32.totalorder %s12, 0
    %p47 = por %p45, %p46
    %p48 = scmp.ne.s32.totalorder %s34, %s35
    %p49 = scmp.eq.s32.totalorder %s13, 1
    %p50 = por %p48, %p49
    %p52 = scmp.ne.s32.totalorder %s35, %s51
    %p53 = scmp.eq.s32.totalorder %s13, 0
    %p54 = por %p52, %p53
    %s55 = ssub.s32 %s14, %s26
    %s56 = ssub.s32 %s15, %s22
    %s57 = sor.u32 %s55, %s56
    %p58 = scmp.eq.s32.totalorder %s57, 0
    %s60 = sadd.s32 %s59, 1
    %s61 = scalar_select %p58, %s59, %s60
    %p64 = pneg %p58
    %p65 = scmp.eq.s32.totalorder %s7, 1
    %p66 = por %p64, %p65
    %p67 = scmp.ne.s32.totalorder %s59, %s62
    %p68 = scmp.eq.s32.totalorder %s7, 0
    %p69 = por %p67, %p68
    %p70 = scmp.ne.s32.totalorder %s59, %s62
    %p71 = scmp.eq.s32.totalorder %s12, 1
    %p72 = por %p70, %p71
    %p73 = scmp.ne.s32.totalorder %s62, %s63
    %p74 = scmp.eq.s32.totalorder %s12, 0
    %p75 = por %p73, %p74
    %p76 = scmp.ne.s32.totalorder %s62, %s63
    %p77 = scmp.eq.s32.totalorder %s13, 1
    %p78 = por %p76, %p77
    %p80 = scmp.ne.s32.totalorder %s63, %s79
    %p81 = scmp.eq.s32.totalorder %s13, 0
    %p82 = por %p80, %p81
    %p83 = scmp.le.s32.totalorder 1, %s7
    %p84 = scmp.lt.s32.totalorder %s7, 3
    %p85 = pnand %p83, %p84
    %p86 = pneg %p85
    // Predicated region
    $region9: #{pose_regressor_forward.5} parent=5 // pred_check
      _
    $region10: #{pose_regressor_forward.5} parent=5 // pred_check_branch
      %88 = sbr.rel (%p85) target = $region12
    $region11: #{pose_regressor_forward.5} parent=5 // pred_region
      %s89 = ssub.s32 %s7, 1
    $region12: #{pose_regressor_forward.5} parent=5 // pred_fallthru
      _
    %p90 = scmp.lt.s32.totalorder %s7, 2
    // Predicated region
    $region13: #{pose_regressor_forward.5} parent=5 // pred_check
      %p91 = pneg %p90
    $region14: #{pose_regressor_forward.5} parent=5 // pred_check_branch
      %93 = sbr.rel (%p91) target = $region16
    $region15: #{pose_regressor_forward.5} parent=5 // pred_region
      // Predicated region
      $region17: #{pose_regressor_forward.5} parent=15 // pred_check
        %p94 = pneg %p41
      $region18: #{pose_regressor_forward.5} parent=15 // pred_check_branch
        %96 = sbr.rel (%p94) target = $region20
      $region19: #{pose_regressor_forward.5} parent=15 // pred_region
        %s97 = smul.u32 2, %s15
        %p98 = scmp.lt.s32.totalorder %s14, 1
        %s99 = scalar_select %p98, %s14, 1
        %p100 = scmp.lt.s32.totalorder %s97, 1
        %s101 = scalar_select %p100, %s97, 1
        %s102 = smul.addr %s99, 2
        %s103 = sadd.s32 %s101, %s102
        %s104 = smul.addr %s103, 2
        %s105 = scalar_lea.vmem %s0, %s104
        %s106 = smul.u32 2, %s15
      $region20: #{pose_regressor_forward.5} parent=15 // pred_fallthru
        _
    $region16: #{pose_regressor_forward.5} parent=5 // pred_fallthru
      _
    %p107 = scmp.le.s32.totalorder 1, %s7
    %p108 = scmp.lt.s32.totalorder %s7, 3
    %p109 = pnand %p107, %p108
    %p110 = pneg %p109
    // Predicated region
    $region21: #{pose_regressor_forward.5} parent=5 // pred_check
      _
    $region22: #{pose_regressor_forward.5} parent=5 // pred_check_branch
      %112 = sbr.rel (%p109) target = $region24
    $region23: #{pose_regressor_forward.5} parent=5 // pred_region
      %s113 = ssub.s32 %s7, 1
      %s114 = smul.u32 2, %s17
      %p115 = scmp.lt.s32.totalorder %s16, 1
      %s116 = scalar_select %p115, %s16, 1
      %p117 = scmp.lt.s32.totalorder %s114, 1
      %s118 = scalar_select %p117, %s114, 1
      %s119 = smul.addr %s116, 2
      %s120 = sadd.s32 %s118, %s119
      %s121 = smul.addr %s120, 2
      %s122 = scalar_lea.vmem %s0, %s121
      %p123 = pneg %p47
      %p124 = pneg %p44
      %p125 = pneg %p75
      %p126 = pneg %p72
      %s127 = smul.u32 2, %s17
      %p128 = scmp.lt.s32.totalorder %s16, 1
      %s129 = scalar_select %p128, %s16, 1
      %p130 = scmp.lt.s32.totalorder %s127, 1
      %s131 = scalar_select %p130, %s127, 1
      %s132 = smul.addr %s129, 2
      %s133 = sadd.s32 %s131, %s132
      %s134 = scalar_lea.vmem %s1, %s133
      %s135 = smul.u32 2, %s17
      %p136 = scmp.lt.s32.totalorder %s16, 1
      %s137 = scalar_select %p136, %s16, 1
      %p138 = scmp.lt.s32.totalorder %s135, 1
      %s139 = scalar_select %p138, %s135, 1
      %s140 = smul.addr %s137, 2
      %s141 = sadd.s32 %s139, %s140
      %s142 = smul.addr %s141, 2
      %s143 = scalar_lea.vmem %s0, %s142
      %s144 = smul.u32 2, %s17
      %s145 = smul.u32 2, %s17
      %p146 = scmp.lt.s32.totalorder %s16, 1
      %s147 = scalar_select %p146, %s16, 1
      %p148 = scmp.lt.s32.totalorder %s145, 1
      %s149 = scalar_select %p148, %s145, 1
      %s150 = smul.addr %s147, 2
      %s151 = sadd.s32 %s149, %s150
      %s152 = scalar_lea.vmem %s1, %s151
      %s153 = smul.u32 2, %s17
      %v154 = vld [vmem:[%s143] sm:$0xf]
      %156 = vst [vmem:[#allocation1] ss:$4 sm:$0xff] %v154
      %v157 = vld.sshfl [vmem:[#allocation1] sm:$0xff pattern:$0x73625140]
      %v158 = vld.sshfl [vmem:[#allocation1 + $0x8] sm:$0xff pattern:$0x73625140]
      %vm161 = vcmask 1041408
      %v162 = vsel %vm161, %v157, -inf
      %v163 = vrot.slane %v162, 4
      %v164 = vmax.f32 %v162, %v163
      %v165 = vrot.slane %v164, 2
      %v166 = vmax.f32 %v164, %v165
      %v167 = vrot.slane %v166, 1
      %v168 = vmax.f32 %v166, %v167
      %v169 = vsel %vm161, %v158, -inf
      %v170 = vrot.slane %v169, 4
      %v171 = vmax.f32 %v169, %v170
      %v172 = vrot.slane %v171, 2
      %v173 = vmax.f32 %v171, %v172
      %v174 = vrot.slane %v173, 1
      %v175 = vmax.f32 %v173, %v174
      %v176 = vlaneseq
      %v177 = vshrl.u32 %v176, 7
      %v180 = vrot.slane %v175, 6
      %v181 = vsel %vm161, %v168, %v180
      %vm183 = vcmp.eq.f32.partialorder %v154, %v181
      %v185 = vunpack.c.l.s4 269488144
      %v186 = vunpack.c.0.s8 %v185
      %v187 = vperm.slane %v177, %v186
      %v188 = vsel %vm183, %v187, 2
      %189 = vst [vmem:[#allocation1] ss:$4 sm:$0xff] %v188
      %v190 = vld.sshfl [vmem:[#allocation1] sm:$0xff pattern:$0x73625140]
      %v191 = vld.sshfl [vmem:[#allocation1 + $0x8] sm:$0xff pattern:$0x73625140]
      %v192 = vsel %vm161, %v190, 2147483647
      %v193 = vrot.slane %v192, 4
      %vm194 = vcmp.lt.s32.totalorder %v192, %v193
      %v195 = vsel %vm194, %v192, %v193
      %v196 = vrot.slane %v195, 2
      %vm197 = vcmp.lt.s32.totalorder %v195, %v196
      %v198 = vsel %vm197, %v195, %v196
      %v199 = vrot.slane %v198, 1
      %vm200 = vcmp.lt.s32.totalorder %v198, %v199
      %v201 = vsel %vm200, %v198, %v199
      %v202 = vsel %vm161, %v191, 2147483647
      %v203 = vrot.slane %v202, 4
      %vm204 = vcmp.lt.s32.totalorder %v202, %v203
      %v205 = vsel %vm204, %v202, %v203
      %v206 = vrot.slane %v205, 2
      %vm207 = vcmp.lt.s32.totalorder %v205, %v206
      %v208 = vsel %vm207, %v205, %v206
      %v209 = vrot.slane %v208, 1
      %vm210 = vcmp.lt.s32.totalorder %v208, %v209
      %v211 = vsel %vm210, %v208, %v209
      %v212 = vrot.slane %v211, 7
      %vm213 = vcmask 1040384
      %v214 = vsel %vm213, %v201, %v212
      %v215 = vlaneseq
      %vm216 = vcmp.ge.s32.totalorder %v215, 0
      %vm217 = vcmp.lt.s32.totalorder %v215, 256
      %vm218 = vmand %vm216, %vm217
      %219 = vst.msk [vmem:[%s152] sm:$0x3] %vm218, %v214
      %s220 = smul.u32 2, %s17
      %p221 = scmp.lt.s32.totalorder %s16, 1
      %s222 = scalar_select %p221, %s16, 1
      %p223 = scmp.lt.s32.totalorder %s220, 1
      %s224 = scalar_select %p223, %s220, 1
      %s225 = smul.addr %s222, 2
      %s226 = sadd.s32 %s224, %s225
      %s227 = scalar_lea.vmem %s1, %s226
      // Predicated region
      $region25: #{pose_regressor_forward.5} parent=23 // pred_check
        %p228 = pneg %p72
      $region26: #{pose_regressor_forward.5} parent=23 // pred_check_branch
        %230 = sbr.rel (%p228) target = $region28
      $region27: #{pose_regressor_forward.5} parent=23 // pred_region
        %s231 = smul.u32 2, %s17
      $region28: #{pose_regressor_forward.5} parent=23 // pred_fallthru
        _
    $region24: #{pose_regressor_forward.5} parent=5 // pred_fallthru
      _
    %p232 = scmp.le.s32.totalorder 2, %s7
    // Predicated region
    $region29: #{pose_regressor_forward.5} parent=5 // pred_check
      %p233 = pneg %p232
    $region30: #{pose_regressor_forward.5} parent=5 // pred_check_branch
      %235 = sbr.rel (%p233) target = $region32
    $region31: #{pose_regressor_forward.5} parent=5 // pred_region
      %s236 = ssub.s32 %s7, 2
      // Predicated region
      $region33: #{pose_regressor_forward.5} parent=31 // pred_check
        %p237 = pneg %p78
      $region34: #{pose_regressor_forward.5} parent=31 // pred_check_branch
        %239 = sbr.rel (%p237) target = $region36
      $region35: #{pose_regressor_forward.5} parent=31 // pred_region
        %s240 = smul.u32 2, %s19
        %p241 = scmp.lt.s32.totalorder %s18, 1
        %s242 = scalar_select %p241, %s18, 1
        %p243 = scmp.lt.s32.totalorder %s240, 1
        %s244 = scalar_select %p243, %s240, 1
        %s245 = smul.addr %s242, 2
        %s246 = sadd.s32 %s244, %s245
        %s247 = scalar_lea.vmem %s1, %s246
      $region36: #{pose_regressor_forward.5} parent=31 // pred_fallthru
        _
    $region32: #{pose_regressor_forward.5} parent=5 // pred_fallthru
      _
  $region6: #{pose_regressor_forward.5} parent=0 // loop_footer
    %s11 = sadd.s32 1, %s7
  $region7: #{pose_regressor_forward.5} parent=0 // loop_footer_branch
    %6 = sbr.rel target = $region3
  $region8: #{pose_regressor_forward.5} parent=0 // loop_exit
    _

// kernel: pose_regressor_forward.3
$region0: #{pose_regressor_forward.3}
  #allocation0 [shape = 'u32[]', space=smem, size = 0x4, offset = 0x4, fixed_abs, tag = 'smem constant byte address 0x4 - core index']
  #allocation1 [shape = 'u32[72,128]{1,0:T(1,128)}', space=vmem, size = 0x9000, scoped, tag = 'internal scratch']
  %s0 = inlined_call_operand.vmem [shape: bf16[2,48,128], index: 0, kind: input, shape index: {}]
  %s1 = inlined_call_operand.vmem [shape: bf16[512,48], index: 1, kind: input, shape index: {}]
  %s2 = inlined_call_operand.vmem [shape: f32[512,1], index: 2, kind: input, shape index: {}]
  %s3 = inlined_call_operand.vmem [shape: bf16[16,512], index: 3, kind: input, shape index: {}]
  %s4 = inlined_call_operand.vmem [shape: f32[16,1], index: 4, kind: input, shape index: {}]
  %s5 = inlined_call_operand.vmem [shape: f32[2,16,128], index: 5, kind: output, shape index: {}]
  %s6 = sld [smem:[#allocation0]]
  $region53: #{pose_regressor_forward.3} parent=0
    _
  %s8 = ssub.s32 1, %s6
  %s9 = scalar_select 0, %s8, %s6
  loop: start=0, step=1, limit=4
  $region2: #{pose_regressor_forward.3} parent=0 // loop_pre_header
    _
  $region3: #{pose_regressor_forward.3} parent=0 // loop_header
    %s11 = sphi 0, %s15
    %p12 = scmp.ge.s32.totalorder %s11, 4
    %s18 = sphi 0, %s30
    %s19 = sphi 0, %s26
    %s20 = sphi 0, %s18
    %s21 = sphi 0, %s19
    %s22 = sphi 0, %s20
    %s23 = sphi 0, %s21
    %s35 = sphi 0, %s37
    %s38 = sphi 0, %s35
    %s39 = sphi 0, %s38
    %s55 = sphi 0, %s39
    %s59 = sphi 0, %s59
    %s61 = sphi 0, %s59
    %s62 = sphi 0, %s61
    %s76 = sphi 0, %s62
    %s80 = sphi 0, %s80
    %s82 = sphi 0, %s80
    %s83 = sphi 0, %s82
    %s97 = sphi 0, %s83
    %s101 = sphi 0, %s101
    %s103 = sphi 0, %s101
    %s104 = sphi 0, %s103
    %s118 = sphi 0, %s104
    %s122 = sphi 0, %s122
    %s124 = sphi 0, %s122
    %s125 = sphi 0, %s124
    %s139 = sphi 0, %s125
    %s147 = sphi 0, %s149
    %s150 = sphi 0, %s147
    %s151 = sphi 0, %s150
    %s167 = sphi 0, %s151
  $region4: #{pose_regressor_forward.3} parent=0 // loop_header_branch
    %14 = sbr.rel (%p12) target = $region8
  $region5: #{pose_regressor_forward.3} parent=0 // loop_body
    %s16 = ssub.s32 %s11, 1
    %s17 = ssub.s32 %s11, 2
    %s24 = sadd.s32 1, %s19
    %p25 = scmp.ge.s32.totalorder %s24, 1
    %s26 = scalar_select %p25, 0, %s24
    %s27 = sadd.s32 1, %s18
    %s28 = scalar_select %p25, %s27, %s18
    %p29 = scmp.ge.s32.totalorder %s28, 2
    %s30 = scalar_select %p29, 0, %s28
    %s31 = ssub.s32 %s18, %s30
    %s32 = ssub.s32 %s19, %s26
    %s33 = sor.u32 %s31, %s32
    %p34 = scmp.eq.s32.totalorder %s33, 0
    %s36 = sadd.s32 %s35, 1
    %s37 = scalar_select %p34, %s35, %s36
    %p40 = pneg %p34
    %p41 = scmp.eq.s32.totalorder %s11, 1
    %p42 = por %p40, %p41
    %p43 = scmp.ne.s32.totalorder %s35, %s38
    %p44 = scmp.eq.s32.totalorder %s11, 0
    %p45 = por %p43, %p44
    %p46 = scmp.ne.s32.totalorder %s35, %s38
    %p47 = scmp.eq.s32.totalorder %s16, 1
    %p48 = por %p46, %p47
    %p49 = scmp.ne.s32.totalorder %s38, %s39
    %p50 = scmp.eq.s32.totalorder %s16, 0
    %p51 = por %p49, %p50
    %p52 = scmp.ne.s32.totalorder %s38, %s39
    %p53 = scmp.eq.s32.totalorder %s17, 1
    %p54 = por %p52, %p53
    %p56 = scmp.ne.s32.totalorder %s39, %s55
    %p57 = scmp.eq.s32.totalorder %s17, 0
    %p58 = por %p56, %p57
    %s60 = sadd.s32 %s59, 1
    %p63 = scmp.eq.s32.totalorder %s11, 1
    %p64 = scmp.ne.s32.totalorder %s59, %s61
    %p65 = scmp.eq.s32.totalorder %s11, 0
    %p66 = por %p64, %p65
    %p67 = scmp.ne.s32.totalorder %s59, %s61
    %p68 = scmp.eq.s32.totalorder %s16, 1
    %p69 = por %p67, %p68
    %p70 = scmp.ne.s32.totalorder %s61, %s62
    %p71 = scmp.eq.s32.totalorder %s16, 0
    %p72 = por %p70, %p71
    %p73 = scmp.ne.s32.totalorder %s61, %s62
    %p74 = scmp.eq.s32.totalorder %s17, 1
    %p75 = por %p73, %p74
    %p77 = scmp.ne.s32.totalorder %s62, %s76
    %p78 = scmp.eq.s32.totalorder %s17, 0
    %p79 = por %p77, %p78
    %s81 = sadd.s32 %s80, 1
    %p84 = scmp.eq.s32.totalorder %s11, 1
    %p85 = scmp.ne.s32.totalorder %s80, %s82
    %p86 = scmp.eq.s32.totalorder %s11, 0
    %p87 = por %p85, %p86
    %p88 = scmp.ne.s32.totalorder %s80, %s82
    %p89 = scmp.eq.s32.totalorder %s16, 1
    %p90 = por %p88, %p89
    %p91 = scmp.ne.s32.totalorder %s82, %s83
    %p92 = scmp.eq.s32.totalorder %s16, 0
    %p93 = por %p91, %p92
    %p94 = scmp.ne.s32.totalorder %s82, %s83
    %p95 = scmp.eq.s32.totalorder %s17, 1
    %p96 = por %p94, %p95
    %p98 = scmp.ne.s32.totalorder %s83, %s97
    %p99 = scmp.eq.s32.totalorder %s17, 0
    %p100 = por %p98, %p99
    %s102 = sadd.s32 %s101, 1
    %p105 = scmp.eq.s32.totalorder %s11, 1
    %p106 = scmp.ne.s32.totalorder %s101, %s103
    %p107 = scmp.eq.s32.totalorder %s11, 0
    %p108 = por %p106, %p107
    %p109 = scmp.ne.s32.totalorder %s101, %s103
    %p110 = scmp.eq.s32.totalorder %s16, 1
    %p111 = por %p109, %p110
    %p112 = scmp.ne.s32.totalorder %s103, %s104
    %p113 = scmp.eq.s32.totalorder %s16, 0
    %p114 = por %p112, %p113
    %p115 = scmp.ne.s32.totalorder %s103, %s104
    %p116 = scmp.eq.s32.totalorder %s17, 1
    %p117 = por %p115, %p116
    %p119 = scmp.ne.s32.totalorder %s104, %s118
    %p120 = scmp.eq.s32.totalorder %s17, 0
    %p121 = por %p119, %p120
    %s123 = sadd.s32 %s122, 1
    %p126 = scmp.eq.s32.totalorder %s11, 1
    %p127 = scmp.ne.s32.totalorder %s122, %s124
    %p128 = scmp.eq.s32.totalorder %s11, 0
    %p129 = por %p127, %p128
    %p130 = scmp.ne.s32.totalorder %s122, %s124
    %p131 = scmp.eq.s32.totalorder %s16, 1
    %p132 = por %p130, %p131
    %p133 = scmp.ne.s32.totalorder %s124, %s125
    %p134 = scmp.eq.s32.totalorder %s16, 0
    %p135 = por %p133, %p134
    %p136 = scmp.ne.s32.totalorder %s124, %s125
    %p137 = scmp.eq.s32.totalorder %s17, 1
    %p138 = por %p136, %p137
    %p140 = scmp.ne.s32.totalorder %s125, %s139
    %p141 = scmp.eq.s32.totalorder %s17, 0
    %p142 = por %p140, %p141
    %s143 = ssub.s32 %s18, %s30
    %s144 = ssub.s32 %s19, %s26
    %s145 = sor.u32 %s143, %s144
    %p146 = scmp.eq.s32.totalorder %s145, 0
    %s148 = sadd.s32 %s147, 1
    %s149 = scalar_select %p146, %s147, %s148
    %p152 = pneg %p146
    %p153 = scmp.eq.s32.totalorder %s11, 1
    %p154 = por %p152, %p153
    %p155 = scmp.ne.s32.totalorder %s147, %s150
    %p156 = scmp.eq.s32.totalorder %s11, 0
    %p157 = por %p155, %p156
    %p158 = scmp.ne.s32.totalorder %s147, %s150
    %p159 = scmp.eq.s32.totalorder %s16, 1
    %p160 = por %p158, %p159
    %p161 = scmp.ne.s32.totalorder %s150, %s151
    %p162 = scmp.eq.s32.totalorder %s16, 0
    %p163 = por %p161, %p162
    %p164 = scmp.ne.s32.totalorder %s150, %s151
    %p165 = scmp.eq.s32.totalorder %s17, 1
    %p166 = por %p164, %p165
    %p168 = scmp.ne.s32.totalorder %s151, %s167
    %p169 = scmp.eq.s32.totalorder %s17, 0
    %p170 = por %p168, %p169
    %p171 = scmp.le.s32.totalorder 1, %s11
    %p172 = scmp.lt.s32.totalorder %s11, 3
    %p173 = pnand %p171, %p172
    %p174 = pneg %p173
    // Predicated region
    $region9: #{pose_regressor_forward.3} parent=5 // pred_check
      _
    $region10: #{pose_regressor_forward.3} parent=5 // pred_check_branch
      %176 = sbr.rel (%p173) target = $region12
    $region11: #{pose_regressor_forward.3} parent=5 // pred_region
      %s177 = ssub.s32 %s11, 1
      // Predicated region
      $region13: #{pose_regressor_forward.3} parent=11 // pred_check
        %p178 = pneg %p72
      $region14: #{pose_regressor_forward.3} parent=11 // pred_check_branch
        %180 = sbr.rel (%p178) target = $region16
      $region15: #{pose_regressor_forward.3} parent=11 // pred_region
        _
      $region16: #{pose_regressor_forward.3} parent=11 // pred_fallthru
        _
      // Predicated region
      $region17: #{pose_regressor_forward.3} parent=11 // pred_check
        %p181 = pneg %p93
      $region18: #{pose_regressor_forward.3} parent=11 // pred_check_branch
        %183 = sbr.rel (%p181) target = $region20
      $region19: #{pose_regressor_forward.3} parent=11 // pred_region
        _
      $region20: #{pose_regressor_forward.3} parent=11 // pred_fallthru
        _
      // Predicated region
      $region21: #{pose_regressor_forward.3} parent=11 // pred_check
        %p184 = pneg %p114
      $region22: #{pose_regressor_forward.3} parent=11 // pred_check_branch
        %186 = sbr.rel (%p184) target = $region24
      $region23: #{pose_regressor_forward.3} parent=11 // pred_region
        _
      $region24: #{pose_regressor_forward.3} parent=11 // pred_fallthru
        _
      // Predicated region
      $region25: #{pose_regressor_forward.3} parent=11 // pred_check
        %p187 = pneg %p135
      $region26: #{pose_regressor_forward.3} parent=11 // pred_check_branch
        %189 = sbr.rel (%p187) target = $region28
      $region27: #{pose_regressor_forward.3} parent=11 // pred_region
        _
      $region28: #{pose_regressor_forward.3} parent=11 // pred_fallthru
        _
    $region12: #{pose_regressor_forward.3} parent=5 // pred_fallthru
      _
    %p190 = scmp.lt.s32.totalorder %s11, 2
    // Predicated region
    $region29: #{pose_regressor_forward.3} parent=5 // pred_check
      %p191 = pneg %p190
    $region30: #{pose_regressor_forward.3} parent=5 // pred_check_branch
      %193 = sbr.rel (%p191) target = $region32
    $region31: #{pose_regressor_forward.3} parent=5 // pred_region
      // Predicated region
      $region33: #{pose_regressor_forward.3} parent=31 // pred_check
        %p194 = pneg %p45
      $region34: #{pose_regressor_forward.3} parent=31 // pred_check_branch
        %196 = sbr.rel (%p194) target = $region36
      $region35: #{pose_regressor_forward.3} parent=31 // pred_region
        %p197 = scmp.lt.s32.totalorder %s18, 1
        %s198 = scalar_select %p197, %s18, 1
        %p199 = scmp.lt.s32.totalorder %s19, 0
        %s200 = scalar_select %p199, %s19, 0
        %s201 = smul.addr %s198, 6
        %s202 = sadd.s32 %s200, %s201
        %s203 = smul.addr %s202, 4
        %s204 = scalar_lea.vmem %s0, %s203
      $region36: #{pose_regressor_forward.3} parent=31 // pred_fallthru
        _
    $region32: #{pose_regressor_forward.3} parent=5 // pred_fallthru
      _
    %p205 = scmp.le.s32.totalorder 1, %s11
    %p206 = scmp.lt.s32.totalorder %s11, 3
    %p207 = pnand %p205, %p206
    %p208 = pneg %p207
    // Predicated region
    $region37: #{pose_regressor_forward.3} parent=5 // pred_check
      _
    $region38: #{pose_regressor_forward.3} parent=5 // pred_check_branch
      %210 = sbr.rel (%p207) target = $region40
    $region39: #{pose_regressor_forward.3} parent=5 // pred_region
      %s211 = ssub.s32 %s11, 1
      %p212 = scmp.lt.s32.totalorder %s20, 1
      %s213 = scalar_select %p212, %s20, 1
      %p214 = scmp.lt.s32.totalorder %s21, 0
      %s215 = scalar_select %p214, %s21, 0
      %s216 = smul.addr %s213, 6
      %s217 = sadd.s32 %s215, %s216
      %s218 = smul.addr %s217, 4
      %s219 = scalar_lea.vmem %s0, %s218
      %p220 = pneg %p51
      %p221 = pneg %p48
      %p222 = pneg %p72
      %p223 = pneg %p69
      %p224 = pneg %p93
      %p225 = pneg %p90
      %p226 = pneg %p114
      %p227 = pneg %p111
      %p228 = pneg %p135
      %p229 = pneg %p132
      %p230 = pneg %p163
      %p231 = pneg %p160
      %p232 = scmp.lt.s32.totalorder %s20, 1
      %s233 = scalar_select %p232, %s20, 1
      %p234 = scmp.lt.s32.totalorder %s21, 0
      %s235 = scalar_select %p234, %s21, 0
      %s236 = smul.addr %s233, 2
      %s237 = sadd.s32 %s235, %s236
      %s238 = smul.addr %s237, 8
      %s239 = scalar_lea.vmem %s5, %s238
      %p240 = scmp.lt.s32.totalorder %s20, 1
      %s241 = scalar_select %p240, %s20, 1
      %p242 = scmp.lt.s32.totalorder %s21, 0
      %s243 = scalar_select %p242, %s21, 0
      %s244 = smul.addr %s241, 6
      %s245 = sadd.s32 %s243, %s244
      %s246 = smul.addr %s245, 4
      %s247 = scalar_lea.vmem %s0, %s246
      %p248 = scmp.lt.s32.totalorder %s20, 1
      %s249 = scalar_select %p248, %s20, 1
      %p250 = scmp.lt.s32.totalorder %s21, 0
      %s251 = scalar_select %p250, %s21, 0
      %s252 = smul.addr %s249, 2
      %s253 = sadd.s32 %s251, %s252
      %s254 = smul.addr %s253, 8
      %s255 = scalar_lea.vmem %s5, %s254
      %v257 = vld [vmem:[%s247] sm:$0xf]
      %v258 = vld [vmem:[%s247 + $0x4] sm:$0xf]
      %v259 = vld [vmem:[%s247 + $0x8] sm:$0xf]
      %v260 = vld [vmem:[%s247 + $0xc] sm:$0xf]
      %v261 = vld [vmem:[%s247 + $0x10] sm:$0xf]
      %v262 = vld [vmem:[%s247 + $0x14] sm:$0xf]
      %v263 = vld [vmem:[%s1] sm:$0xf]
      %v264 = vld [vmem:[%s1 + $0x4] sm:$0xf]
      %v265 = vld [vmem:[%s1 + $0x8] sm:$0xf]
      %v266 = vld [vmem:[%s1 + $0xc] sm:$0xf]
      %v267 = vld [vmem:[%s1 + $0x10] sm:$0xf]
      %v268 = vld [vmem:[%s1 + $0x14] sm:$0xf]
      %v269 = vld [vmem:[%s1 + $0x18] sm:$0xf]
      %v270 = vld [vmem:[%s1 + $0x1c] sm:$0xf]
      %v271 = vld [vmem:[%s1 + $0x20] sm:$0xf]
      %v272 = vld [vmem:[%s1 + $0x24] sm:$0xf]
      %v273 = vld [vmem:[%s1 + $0x28] sm:$0xf]
      %v274 = vld [vmem:[%s1 + $0x2c] sm:$0xf]
      %v275 = vld [vmem:[%s1 + $0x30] sm:$0xf]
      %v276 = vld [vmem:[%s1 + $0x34] sm:$0xf]
      %v277 = vld [vmem:[%s1 + $0x38] sm:$0xf]
      %v278 = vld [vmem:[%s1 + $0x3c] sm:$0xf]
      %v279 = vld [vmem:[%s1 + $0x40] sm:$0xf]
      %v280 = vld [vmem:[%s1 + $0x44] sm:$0xf]
      %v281 = vld [vmem:[%s1 + $0x48] sm:$0xf]
      %v282 = vld [vmem:[%s1 + $0x4c] sm:$0xf]
      %v283 = vld [vmem:[%s1 + $0x50] sm:$0xf]
      %v284 = vld [vmem:[%s1 + $0x54] sm:$0xf]
      %v285 = vld [vmem:[%s1 + $0x58] sm:$0xf]
      %v286 = vld [vmem:[%s1 + $0x5c] sm:$0xf]
      %v287 = vld [vmem:[%s1 + $0x60] sm:$0xf]
      %v288 = vld [vmem:[%s1 + $0x64] sm:$0xf]
      %v289 = vld [vmem:[%s1 + $0x68] sm:$0xf]
      %v290 = vld [vmem:[%s1 + $0x6c] sm:$0xf]
      %v291 = vld [vmem:[%s1 + $0x70] sm:$0xf]
      %v292 = vld [vmem:[%s1 + $0x74] sm:$0xf]
      %v293 = vld [vmem:[%s1 + $0x78] sm:$0xf]
      %v294 = vld [vmem:[%s1 + $0x7c] sm:$0xf]
      %v295 = vld [vmem:[%s1 + $0x80] sm:$0xf]
      %v296 = vld [vmem:[%s1 + $0x84] sm:$0xf]
      %v297 = vld [vmem:[%s1 + $0x88] sm:$0xf]
      %v298 = vld [vmem:[%s1 + $0x8c] sm:$0xf]
      %v299 = vld [vmem:[%s1 + $0x90] sm:$0xf]
      %v300 = vld [vmem:[%s1 + $0x94] sm:$0xf]
      %v301 = vld [vmem:[%s1 + $0x98] sm:$0xf]
      %v302 = vld [vmem:[%s1 + $0x9c] sm:$0xf]
      %v303 = vld [vmem:[%s1 + $0xa0] sm:$0xf]
      %v304 = vld [vmem:[%s1 + $0xa4] sm:$0xf]
      %v305 = vld [vmem:[%s1 + $0xa8] sm:$0xf]
      %v306 = vld [vmem:[%s1 + $0xac] sm:$0xf]
      %v307 = vld [vmem:[%s1 + $0xb0] sm:$0xf]
      %v308 = vld [vmem:[%s1 + $0xb4] sm:$0xf]
      %v309 = vld [vmem:[%s1 + $0xb8] sm:$0xf]
      %v310 = vld [vmem:[%s1 + $0xbc] sm:$0xf]
      %v311 = vld [vmem:[%s1 + $0xc0] sm:$0xf]
      %v312 = vld [vmem:[%s1 + $0xc4] sm:$0xf]
      %v313 = vld [vmem:[%s1 + $0xc8] sm:$0xf]
      %v314 = vld [vmem:[%s1 + $0xcc] sm:$0xf]
      %v315 = vld [vmem:[%s1 + $0xd0] sm:$0xf]
      %v316 = vld [vmem:[%s1 + $0xd4] sm:$0xf]
      %v317 = vld [vmem:[%s1 + $0xd8] sm:$0xf]
      %v318 = vld [vmem:[%s1 + $0xdc] sm:$0xf]
      %v319 = vld [vmem:[%s1 + $0xe0] sm:$0xf]
      %v320 = vld [vmem:[%s1 + $0xe4] sm:$0xf]
      %v321 = vld [vmem:[%s1 + $0xe8] sm:$0xf]
      %v322 = vld [vmem:[%s1 + $0xec] sm:$0xf]
      %v323 = vld [vmem:[%s1 + $0xf0] sm:$0xf]
      %v324 = vld [vmem:[%s1 + $0xf4] sm:$0xf]
      %v325 = vld [vmem:[%s1 + $0xf8] sm:$0xf]
      %v326 = vld [vmem:[%s1 + $0xfc] sm:$0xf]
      %v327 = vld [vmem:[%s2] sm:$0xff]
      %v328 = vld [vmem:[%s2 + $0x8] sm:$0xff]
      %v329 = vld [vmem:[%s2 + $0x10] sm:$0xff]
      %v330 = vld [vmem:[%s2 + $0x18] sm:$0xff]
      %v331 = vld [vmem:[%s2 + $0x20] sm:$0xff]
      %v332 = vld [vmem:[%s2 + $0x28] sm:$0xff]
      %v333 = vld [vmem:[%s2 + $0x30] sm:$0xff]
      %v334 = vld [vmem:[%s2 + $0x38] sm:$0xff]
      %v335 = vld [vmem:[%s2 + $0x40] sm:$0xff]
      %v336 = vld [vmem:[%s2 + $0x48] sm:$0xff]
      %v337 = vld [vmem:[%s2 + $0x50] sm:$0xff]
      %v338 = vld [vmem:[%s2 + $0x58] sm:$0xff]
      %v339 = vld [vmem:[%s2 + $0x60] sm:$0xff]
      %v340 = vld [vmem:[%s2 + $0x68] sm:$0xff]
      %v341 = vld [vmem:[%s2 + $0x70] sm:$0xff]
      %v342 = vld [vmem:[%s2 + $0x78] sm:$0xff]
      %v343 = vld [vmem:[%s2 + $0x80] sm:$0xff]
      %v344 = vld [vmem:[%s2 + $0x88] sm:$0xff]
      %v345 = vld [vmem:[%s2 + $0x90] sm:$0xff]
      %v346 = vld [vmem:[%s2 + $0x98] sm:$0xff]
      %v347 = vld [vmem:[%s2 + $0xa0] sm:$0xff]
      %v348 = vld [vmem:[%s2 + $0xa8] sm:$0xff]
      %v349 = vld [vmem:[%s2 + $0xb0] sm:$0xff]
      %v350 = vld [vmem:[%s2 + $0xb8] sm:$0xff]
      %v351 = vld [vmem:[%s2 + $0xc0] sm:$0xff]
      %v352 = vld [vmem:[%s2 + $0xc8] sm:$0xff]
      %v353 = vld [vmem:[%s2 + $0xd0] sm:$0xff]
      %v354 = vld [vmem:[%s2 + $0xd8] sm:$0xff]
      %v355 = vld [vmem:[%s2 + $0xe0] sm:$0xff]
      %v356 = vld [vmem:[%s2 + $0xe8] sm:$0xff]
      %v357 = vld [vmem:[%s2 + $0xf0] sm:$0xff]
      %v358 = vld [vmem:[%s2 + $0xf8] sm:$0xff]
      %v359 = vld [vmem:[%s2 + $0x100] sm:$0xff]
      %v360 = vld [vmem:[%s2 + $0x108] sm:$0xff]
      %v361 = vld [vmem:[%s2 + $0x110] sm:$0xff]
      %v362 = vld [vmem:[%s2 + $0x118] sm:$0xff]
      %v363 = vld [vmem:[%s2 + $0x120] sm:$0xff]
      %v364 = vld [vmem:[%s2 + $0x128] sm:$0xff]
      %v365 = vld [vmem:[%s2 + $0x130] sm:$0xff]
      %v366 = vld [vmem:[%s2 + $0x138] sm:$0xff]
      %v367 = vld [vmem:[%s2 + $0x140] sm:$0xff]
      %v368 = vld [vmem:[%s2 + $0x148] sm:$0xff]
      %v369 = vld [vmem:[%s2 + $0x150] sm:$0xff]
      %v370 = vld [vmem:[%s2 + $0x158] sm:$0xff]
      %v371 = vld [vmem:[%s2 + $0x160] sm:$0xff]
      %v372 = vld [vmem:[%s2 + $0x168] sm:$0xff]
      %v373 = vld [vmem:[%s2 + $0x170] sm:$0xff]
      %v374 = vld [vmem:[%s2 + $0x178] sm:$0xff]
      %v375 = vld [vmem:[%s2 + $0x180] sm:$0xff]
      %v376 = vld [vmem:[%s2 + $0x188] sm:$0xff]
      %v377 = vld [vmem:[%s2 + $0x190] sm:$0xff]
      %v378 = vld [vmem:[%s2 + $0x198] sm:$0xff]
      %v379 = vld [vmem:[%s2 + $0x1a0] sm:$0xff]
      %v380 = vld [vmem:[%s2 + $0x1a8] sm:$0xff]
      %v381 = vld [vmem:[%s2 + $0x1b0] sm:$0xff]
      %v382 = vld [vmem:[%s2 + $0x1b8] sm:$0xff]
      %v383 = vld [vmem:[%s2 + $0x1c0] sm:$0xff]
      %v384 = vld [vmem:[%s2 + $0x1c8] sm:$0xff]
      %v385 = vld [vmem:[%s2 + $0x1d0] sm:$0xff]
      %v386 = vld [vmem:[%s2 + $0x1d8] sm:$0xff]
      %v387 = vld [vmem:[%s2 + $0x1e0] sm:$0xff]
      %v388 = vld [vmem:[%s2 + $0x1e8] sm:$0xff]
      %v389 = vld [vmem:[%s2 + $0x1f0] sm:$0xff]
      %v390 = vld [vmem:[%s2 + $0x1f8] sm:$0xff]
      %392 = vset.pattern.permute.xlu0 0
      %393 = vperm.xlu0 %392, %v327
      %v394 = vpop.permute.xlu0 %393
      %397 = vset.pattern.permute.xlu0 0
      %398 = vperm.xlu0 %397, %v328
      %v399 = vpop.permute.xlu0 %398
      %402 = vset.pattern.permute.xlu0 0
      %403 = vperm.xlu0 %402, %v329
      %v404 = vpop.permute.xlu0 %403
      %407 = vset.pattern.permute.xlu0 0
      %408 = vperm.xlu0 %407, %v330
      %v409 = vpop.permute.xlu0 %408
      %412 = vset.pattern.permute.xlu0 0
      %413 = vperm.xlu0 %412, %v331
      %v414 = vpop.permute.xlu0 %413
      %417 = vset.pattern.permute.xlu0 0
      %418 = vperm.xlu0 %417, %v332
      %v419 = vpop.permute.xlu0 %418
      %422 = vset.pattern.permute.xlu0 0
      %423 = vperm.xlu0 %422, %v333
      %v424 = vpop.permute.xlu0 %423
      %427 = vset.pattern.permute.xlu0 0
      %428 = vperm.xlu0 %427, %v334
      %v429 = vpop.permute.xlu0 %428
      %432 = vset.pattern.permute.xlu0 0
      %433 = vperm.xlu0 %432, %v335
      %v434 = vpop.permute.xlu0 %433
      %437 = vset.pattern.permute.xlu0 0
      %438 = vperm.xlu0 %437, %v336
      %v439 = vpop.permute.xlu0 %438
      %442 = vset.pattern.permute.xlu0 0
      %443 = vperm.xlu0 %442, %v337
      %v444 = vpop.permute.xlu0 %443
      %447 = vset.pattern.permute.xlu0 0
      %448 = vperm.xlu0 %447, %v338
      %v449 = vpop.permute.xlu0 %448
      %452 = vset.pattern.permute.xlu0 0
      %453 = vperm.xlu0 %452, %v339
      %v454 = vpop.permute.xlu0 %453
      %457 = vset.pattern.permute.xlu0 0
      %458 = vperm.xlu0 %457, %v340
      %v459 = vpop.permute.xlu0 %458
      %462 = vset.pattern.permute.xlu0 0
      %463 = vperm.xlu0 %462, %v341
      %v464 = vpop.permute.xlu0 %463
      %467 = vset.pattern.permute.xlu0 0
      %468 = vperm.xlu0 %467, %v342
      %v469 = vpop.permute.xlu0 %468
      %472 = vset.pattern.permute.xlu0 0
      %473 = vperm.xlu0 %472, %v343
      %v474 = vpop.permute.xlu0 %473
      %477 = vset.pattern.permute.xlu0 0
      %478 = vperm.xlu0 %477, %v344
      %v479 = vpop.permute.xlu0 %478
      %482 = vset.pattern.permute.xlu0 0
      %483 = vperm.xlu0 %482, %v345
      %v484 = vpop.permute.xlu0 %483
      %487 = vset.pattern.permute.xlu0 0
      %488 = vperm.xlu0 %487, %v346
      %v489 = vpop.permute.xlu0 %488
      %492 = vset.pattern.permute.xlu0 0
      %493 = vperm.xlu0 %492, %v347
      %v494 = vpop.permute.xlu0 %493
      %497 = vset.pattern.permute.xlu0 0
      %498 = vperm.xlu0 %497, %v348
      %v499 = vpop.permute.xlu0 %498
      %502 = vset.pattern.permute.xlu0 0
      %503 = vperm.xlu0 %502, %v349
      %v504 = vpop.permute.xlu0 %503
      %507 = vset.pattern.permute.xlu0 0
      %508 = vperm.xlu0 %507, %v350
      %v509 = vpop.permute.xlu0 %508
      %512 = vset.pattern.permute.xlu0 0
      %513 = vperm.xlu0 %512, %v351
      %v514 = vpop.permute.xlu0 %513
      %517 = vset.pattern.permute.xlu0 0
      %518 = vperm.xlu0 %517, %v352
      %v519 = vpop.permute.xlu0 %518
      %522 = vset.pattern.permute.xlu0 0
      %523 = vperm.xlu0 %522, %v353
      %v524 = vpop.permute.xlu0 %523
      %527 = vset.pattern.permute.xlu0 0
      %528 = vperm.xlu0 %527, %v354
      %v529 = vpop.permute.xlu0 %528
      %532 = vset.pattern.permute.xlu0 0
      %533 = vperm.xlu0 %532, %v355
      %v534 = vpop.permute.xlu0 %533
      %537 = vset.pattern.permute.xlu0 0
      %538 = vperm.xlu0 %537, %v356
      %v539 = vpop.permute.xlu0 %538
      %542 = vset.pattern.permute.xlu0 0
      %543 = vperm.xlu0 %542, %v357
      %v544 = vpop.permute.xlu0 %543
      %547 = vset.pattern.permute.xlu0 0
      %548 = vperm.xlu0 %547, %v358
      %v549 = vpop.permute.xlu0 %548
      %552 = vset.pattern.permute.xlu0 0
      %553 = vperm.xlu0 %552, %v359
      %v554 = vpop.permute.xlu0 %553
      %557 = vset.pattern.permute.xlu0 0
      %558 = vperm.xlu0 %557, %v360
      %v559 = vpop.permute.xlu0 %558
      %562 = vset.pattern.permute.xlu0 0
      %563 = vperm.xlu0 %562, %v361
      %v564 = vpop.permute.xlu0 %563
      %567 = vset.pattern.permute.xlu0 0
      %568 = vperm.xlu0 %567, %v362
      %v569 = vpop.permute.xlu0 %568
      %572 = vset.pattern.permute.xlu0 0
      %573 = vperm.xlu0 %572, %v363
      %v574 = vpop.permute.xlu0 %573
      %577 = vset.pattern.permute.xlu0 0
      %578 = vperm.xlu0 %577, %v364
      %v579 = vpop.permute.xlu0 %578
      %582 = vset.pattern.permute.xlu0 0
      %583 = vperm.xlu0 %582, %v365
      %v584 = vpop.permute.xlu0 %583
      %587 = vset.pattern.permute.xlu0 0
      %588 = vperm.xlu0 %587, %v366
      %v589 = vpop.permute.xlu0 %588
      %592 = vset.pattern.permute.xlu0 0
      %593 = vperm.xlu0 %592, %v367
      %v594 = vpop.permute.xlu0 %593
      %597 = vset.pattern.permute.xlu0 0
      %598 = vperm.xlu0 %597, %v368
      %v599 = vpop.permute.xlu0 %598
      %602 = vset.pattern.permute.xlu0 0
      %603 = vperm.xlu0 %602, %v369
      %v604 = vpop.permute.xlu0 %603
      %607 = vset.pattern.permute.xlu0 0
      %608 = vperm.xlu0 %607, %v370
      %v609 = vpop.permute.xlu0 %608
      %612 = vset.pattern.permute.xlu0 0
      %613 = vperm.xlu0 %612, %v371
      %v614 = vpop.permute.xlu0 %613
      %617 = vset.pattern.permute.xlu0 0
      %618 = vperm.xlu0 %617, %v372
      %v619 = vpop.permute.xlu0 %618
      %622 = vset.pattern.permute.xlu0 0
      %623 = vperm.xlu0 %622, %v373
      %v624 = vpop.permute.xlu0 %623
      %627 = vset.pattern.permute.xlu0 0
      %628 = vperm.xlu0 %627, %v374
      %v629 = vpop.permute.xlu0 %628
      %632 = vset.pattern.permute.xlu0 0
      %633 = vperm.xlu0 %632, %v375
      %v634 = vpop.permute.xlu0 %633
      %637 = vset.pattern.permute.xlu0 0
      %638 = vperm.xlu0 %637, %v376
      %v639 = vpop.permute.xlu0 %638
      %642 = vset.pattern.permute.xlu0 0
      %643 = vperm.xlu0 %642, %v377
      %v644 = vpop.permute.xlu0 %643
      %647 = vset.pattern.permute.xlu0 0
      %648 = vperm.xlu0 %647, %v378
      %v649 = vpop.permute.xlu0 %648
      %652 = vset.pattern.permute.xlu0 0
      %653 = vperm.xlu0 %652, %v379
      %v654 = vpop.permute.xlu0 %653
      %657 = vset.pattern.permute.xlu0 0
      %658 = vperm.xlu0 %657, %v380
      %v659 = vpop.permute.xlu0 %658
      %662 = vset.pattern.permute.xlu0 0
      %663 = vperm.xlu0 %662, %v381
      %v664 = vpop.permute.xlu0 %663
      %667 = vset.pattern.permute.xlu0 0
      %668 = vperm.xlu0 %667, %v382
      %v669 = vpop.permute.xlu0 %668
      %672 = vset.pattern.permute.xlu0 0
      %673 = vperm.xlu0 %672, %v383
      %v674 = vpop.permute.xlu0 %673
      %677 = vset.pattern.permute.xlu0 0
      %678 = vperm.xlu0 %677, %v384
      %v679 = vpop.permute.xlu0 %678
      %682 = vset.pattern.permute.xlu0 0
      %683 = vperm.xlu0 %682, %v385
      %v684 = vpop.permute.xlu0 %683
      %687 = vset.pattern.permute.xlu0 0
      %688 = vperm.xlu0 %687, %v386
      %v689 = vpop.permute.xlu0 %688
      %692 = vset.pattern.permute.xlu0 0
      %693 = vperm.xlu0 %692, %v387
      %v694 = vpop.permute.xlu0 %693
      %697 = vset.pattern.permute.xlu0 0
      %698 = vperm.xlu0 %697, %v388
      %v699 = vpop.permute.xlu0 %698
      %702 = vset.pattern.permute.xlu0 0
      %703 = vperm.xlu0 %702, %v389
      %v704 = vpop.permute.xlu0 %703
      %707 = vset.pattern.permute.xlu0 0
      %708 = vperm.xlu0 %707, %v390
      %v709 = vpop.permute.xlu0 %708
      %v775 = vunpack.c.l.b16 %v263
      %v776 = vunpack.c.l.b16 %v264
      %v777 = vunpack.c.l.b16 %v265
      %v778 = vunpack.c.l.b16 %v266
      %v779 = vunpack.c.l.b16 %v267
      %v780 = vunpack.c.l.b16 %v268
      %v781 = vunpack.c.l.b16 %v269
      %v782 = vunpack.c.l.b16 %v270
      %v783 = vunpack.c.l.b16 %v271
      %v784 = vunpack.c.l.b16 %v272
      %v785 = vunpack.c.l.b16 %v273
      %v786 = vunpack.c.l.b16 %v274
      %v787 = vunpack.c.l.b16 %v275
      %v788 = vunpack.c.l.b16 %v276
      %v789 = vunpack.c.l.b16 %v277
      %v790 = vunpack.c.l.b16 %v278
      %v791 = vunpack.c.l.b16 %v279
      %v792 = vunpack.c.l.b16 %v280
      %v793 = vunpack.c.l.b16 %v281
      %v794 = vunpack.c.l.b16 %v282
      %v795 = vunpack.c.l.b16 %v283
      %v796 = vunpack.c.l.b16 %v284
      %v797 = vunpack.c.l.b16 %v285
      %v798 = vunpack.c.l.b16 %v286
      %v799 = vunpack.c.l.b16 %v287
      %v800 = vunpack.c.l.b16 %v288
      %v801 = vunpack.c.l.b16 %v289
      %v802 = vunpack.c.l.b16 %v290
      %v803 = vunpack.c.l.b16 %v291
      %v804 = vunpack.c.l.b16 %v292
      %v805 = vunpack.c.l.b16 %v293
      %v806 = vunpack.c.l.b16 %v294
      %v807 = vunpack.c.l.b16 %v295
      %v808 = vunpack.c.l.b16 %v296
      %v809 = vunpack.c.l.b16 %v297
      %v810 = vunpack.c.l.b16 %v298
      %v811 = vunpack.c.l.b16 %v299
      %v812 = vunpack.c.l.b16 %v300
      %v813 = vunpack.c.l.b16 %v301
      %v814 = vunpack.c.l.b16 %v302
      %v815 = vunpack.c.l.b16 %v303
      %v816 = vunpack.c.l.b16 %v304
      %v817 = vunpack.c.l.b16 %v305
      %v818 = vunpack.c.l.b16 %v306
      %v819 = vunpack.c.l.b16 %v307
      %v820 = vunpack.c.l.b16 %v308
      %v821 = vunpack.c.l.b16 %v309
      %v822 = vunpack.c.l.b16 %v310
      %v823 = vunpack.c.l.b16 %v311
      %v824 = vunpack.c.l.b16 %v312
      %v825 = vunpack.c.l.b16 %v313
      %v826 = vunpack.c.l.b16 %v314
      %v827 = vunpack.c.l.b16 %v315
      %v828 = vunpack.c.l.b16 %v316
      %v829 = vunpack.c.l.b16 %v317
      %v830 = vunpack.c.l.b16 %v318
      %v831 = vunpack.c.l.b16 %v319
      %v832 = vunpack.c.l.b16 %v320
      %v833 = vunpack.c.l.b16 %v321
      %v834 = vunpack.c.l.b16 %v322
      %v835 = vunpack.c.l.b16 %v323
      %v836 = vunpack.c.l.b16 %v324
      %v837 = vunpack.c.l.b16 %v325
      %v838 = vunpack.c.l.b16 %v326
      %v839 = vpack.c.b16 %v776, %v775
      %v840 = vpack.c.b16 %v778, %v777
      %v841 = vpack.c.b16 %v780, %v779
      %v842 = vpack.c.b16 %v782, %v781
      %v843 = vpack.c.b16 %v784, %v783
      %v844 = vpack.c.b16 %v786, %v785
      %v845 = vpack.c.b16 %v788, %v787
      %v846 = vpack.c.b16 %v790, %v789
      %v847 = vpack.c.b16 %v792, %v791
      %v848 = vpack.c.b16 %v794, %v793
      %v849 = vpack.c.b16 %v796, %v795
      %v850 = vpack.c.b16 %v798, %v797
      %v851 = vpack.c.b16 %v800, %v799
      %v852 = vpack.c.b16 %v802, %v801
      %v853 = vpack.c.b16 %v804, %v803
      %v854 = vpack.c.b16 %v806, %v805
      %v855 = vpack.c.b16 %v808, %v807
      %v856 = vpack.c.b16 %v810, %v809
      %v857 = vpack.c.b16 %v812, %v811
      %v858 = vpack.c.b16 %v814, %v813
      %v859 = vpack.c.b16 %v816, %v815
      %v860 = vpack.c.b16 %v818, %v817
      %v861 = vpack.c.b16 %v820, %v819
      %v862 = vpack.c.b16 %v822, %v821
      %v863 = vpack.c.b16 %v824, %v823
      %v864 = vpack.c.b16 %v826, %v825
      %v865 = vpack.c.b16 %v828, %v827
      %v866 = vpack.c.b16 %v830, %v829
      %v867 = vpack.c.b16 %v832, %v831
      %v868 = vpack.c.b16 %v834, %v833
      %v869 = vpack.c.b16 %v836, %v835
      %v870 = vpack.c.b16 %v838, %v837
      %v877 = vunpack.c.l.b16 %v257
      %v878 = vunpack.c.l.b16 %v258
      %v879 = vunpack.c.l.b16 %v259
      %v880 = vunpack.c.l.b16 %v260
      %v881 = vunpack.c.l.b16 %v261
      %v882 = vunpack.c.l.b16 %v262
      %v883 = vpack.c.b16 %v878, %v877
      %v884 = vpack.c.b16 %v880, %v879
      %v885 = vpack.c.b16 %v882, %v881
      %vm889 = vcmask 392192
      %v891 = vsel %vm889, %v839, 0
      %v894 = vsel %vm889, %v840, 0
      %v897 = vsel %vm889, %v841, 0
      %v900 = vsel %vm889, %v842, 0
      %v903 = vsel %vm889, %v843, 0
      %v906 = vsel %vm889, %v844, 0
      %v909 = vsel %vm889, %v845, 0
      %v912 = vsel %vm889, %v846, 0
      %v915 = vsel %vm889, %v847, 0
      %v918 = vsel %vm889, %v848, 0
      %v921 = vsel %vm889, %v849, 0
      %v924 = vsel %vm889, %v850, 0
      %v927 = vsel %vm889, %v851, 0
      %v930 = vsel %vm889, %v852, 0
      %v933 = vsel %vm889, %v853, 0
      %v936 = vsel %vm889, %v854, 0
      %v939 = vsel %vm889, %v855, 0
      %v942 = vsel %vm889, %v856, 0
      %v945 = vsel %vm889, %v857, 0
      %v948 = vsel %vm889, %v858, 0
      %v951 = vsel %vm889, %v859, 0
      %v954 = vsel %vm889, %v860, 0
      %v957 = vsel %vm889, %v861, 0
      %v960 = vsel %vm889, %v862, 0
      %v963 = vsel %vm889, %v863, 0
      %v966 = vsel %vm889, %v864, 0
      %v969 = vsel %vm889, %v865, 0
      %v972 = vsel %vm889, %v866, 0
      %v975 = vsel %vm889, %v867, 0
      %v978 = vsel %vm889, %v868, 0
      %v981 = vsel %vm889, %v869, 0
      %v984 = vsel %vm889, %v870, 0
      %986 = vmatpush.bf16.msra.mxu0 0
      %987 = vmatpush.bf16.msra.mxu0 0
      %988 = vmatpush.bf16.msra.mxu0 0
      %989 = vmatpush.bf16.msra.mxu0 0
      %990 = vmatpush.bf16.msra.mxu0 0
      %991 = vmatpush.bf16.msra.mxu0 %v885
      %992 = vmatpush.bf16.msra.mxu0 %v884
      %993 = vmatpush.bf16.msra.mxu0 %v883
      %994 = vmatmul.bf16.gmra.mxu0 %v891
      %v995 = vpop.f32.mrf.mxu0
      %v996 = vadd.f32 %v394, %v995
      %v997 = vpop.f32.mrf.mxu0
      %v998 = vadd.f32 %v399, %v997
      %999 = vmatmul.bf16.gmra.mxu0 %v894
      %v1000 = vpop.f32.mrf.mxu0
      %v1001 = vadd.f32 %v404, %v1000
      %v1002 = vpop.f32.mrf.mxu0
      %v1003 = vadd.f32 %v409, %v1002
      %1004 = vmatmul.bf16.gmra.mxu0 %v897
      %v1005 = vpop.f32.mrf.mxu0
      %v1006 = vadd.f32 %v414, %v1005
      %v1007 = vpop.f32.mrf.mxu0
      %v1008 = vadd.f32 %v419, %v1007
      %1009 = vmatmul.bf16.gmra.mxu0 %v900
      %v1010 = vpop.f32.mrf.mxu0
      %v1011 = vadd.f32 %v424, %v1010
      %v1012 = vpop.f32.mrf.mxu0
      %v1013 = vadd.f32 %v429, %v1012
      %1014 = vmatmul.bf16.gmra.mxu0 %v903
      %v1015 = vpop.f32.mrf.mxu0
      %v1016 = vadd.f32 %v434, %v1015
      %v1017 = vpop.f32.mrf.mxu0
      %v1018 = vadd.f32 %v439, %v1017
      %1019 = vmatmul.bf16.gmra.mxu0 %v906
      %v1020 = vpop.f32.mrf.mxu0
      %v1021 = vadd.f32 %v444, %v1020
      %v1022 = vpop.f32.mrf.mxu0
      %v1023 = vadd.f32 %v449, %v1022
      %1024 = vmatmul.bf16.gmra.mxu0 %v909
      %v1025 = vpop.f32.mrf.mxu0
      %v1026 = vadd.f32 %v454, %v1025
      %v1027 = vpop.f32.mrf.mxu0
      %v1028 = vadd.f32 %v459, %v1027
      %1029 = vmatmul.bf16.gmra.mxu0 %v912
      %v1030 = vpop.f32.mrf.mxu0
      %v1031 = vadd.f32 %v464, %v1030
      %v1032 = vpop.f32.mrf.mxu0
      %v1033 = vadd.f32 %v469, %v1032
      %1034 = vmatmul.bf16.gmra.mxu0 %v915
      %v1035 = vpop.f32.mrf.mxu0
      %v1036 = vadd.f32 %v474, %v1035
      %v1037 = vpop.f32.mrf.mxu0
      %v1038 = vadd.f32 %v479, %v1037
      %1039 = vmatmul.bf16.gmra.mxu0 %v918
      %v1040 = vpop.f32.mrf.mxu0
      %v1041 = vadd.f32 %v484, %v1040
      %v1042 = vpop.f32.mrf.mxu0
      %v1043 = vadd.f32 %v489, %v1042
      %1044 = vmatmul.bf16.gmra.mxu0 %v921
      %v1045 = vpop.f32.mrf.mxu0
      %v1046 = vadd.f32 %v494, %v1045
      %v1047 = vpop.f32.mrf.mxu0
      %v1048 = vadd.f32 %v499, %v1047
      %1049 = vmatmul.bf16.gmra.mxu0 %v924
      %v1050 = vpop.f32.mrf.mxu0
      %v1051 = vadd.f32 %v504, %v1050
      %v1052 = vpop.f32.mrf.mxu0
      %v1053 = vadd.f32 %v509, %v1052
      %1054 = vmatmul.bf16.gmra.mxu0 %v927
      %v1055 = vpop.f32.mrf.mxu0
      %v1056 = vadd.f32 %v514, %v1055
      %v1057 = vpop.f32.mrf.mxu0
      %v1058 = vadd.f32 %v519, %v1057
      %1059 = vmatmul.bf16.gmra.mxu0 %v930
      %v1060 = vpop.f32.mrf.mxu0
      %v1061 = vadd.f32 %v524, %v1060
      %v1062 = vpop.f32.mrf.mxu0
      %v1063 = vadd.f32 %v529, %v1062
      %1064 = vmatmul.bf16.gmra.mxu0 %v933
      %v1065 = vpop.f32.mrf.mxu0
      %v1066 = vadd.f32 %v534, %v1065
      %v1067 = vpop.f32.mrf.mxu0
      %v1068 = vadd.f32 %v539, %v1067
      %1069 = vmatmul.bf16.gmra.mxu0 %v936
      %v1070 = vpop.f32.mrf.mxu0
      %v1071 = vadd.f32 %v544, %v1070
      %v1072 = vpop.f32.mrf.mxu0
      %v1073 = vadd.f32 %v549, %v1072
      %1074 = vmatmul.bf16.gmra.mxu0 %v939
      %v1075 = vpop.f32.mrf.mxu0
      %v1076 = vadd.f32 %v554, %v1075
      %v1077 = vpop.f32.mrf.mxu0
      %v1078 = vadd.f32 %v559, %v1077
      %1079 = vmatmul.bf16.gmra.mxu0 %v942
      %v1080 = vpop.f32.mrf.mxu0
      %v1081 = vadd.f32 %v564, %v1080
      %v1082 = vpop.f32.mrf.mxu0
      %v1083 = vadd.f32 %v569, %v1082
      %1084 = vmatmul.bf16.gmra.mxu0 %v945
      %v1085 = vpop.f32.mrf.mxu0
      %v1086 = vadd.f32 %v574, %v1085
      %v1087 = vpop.f32.mrf.mxu0
      %v1088 = vadd.f32 %v579, %v1087
      %1089 = vmatmul.bf16.gmra.mxu0 %v948
      %v1090 = vpop.f32.mrf.mxu0
      %v1091 = vadd.f32 %v584, %v1090
      %v1092 = vpop.f32.mrf.mxu0
      %v1093 = vadd.f32 %v589, %v1092
      %1094 = vmatmul.bf16.gmra.mxu0 %v951
      %v1095 = vpop.f32.mrf.mxu0
      %v1096 = vadd.f32 %v594, %v1095
      %v1097 = vpop.f32.mrf.mxu0
      %v1098 = vadd.f32 %v599, %v1097
      %1099 = vmatmul.bf16.gmra.mxu0 %v954
      %v1100 = vpop.f32.mrf.mxu0
      %v1101 = vadd.f32 %v604, %v1100
      %v1102 = vpop.f32.mrf.mxu0
      %v1103 = vadd.f32 %v609, %v1102
      %1104 = vmatmul.bf16.gmra.mxu0 %v957
      %v1105 = vpop.f32.mrf.mxu0
      %v1106 = vadd.f32 %v614, %v1105
      %v1107 = vpop.f32.mrf.mxu0
      %v1108 = vadd.f32 %v619, %v1107
      %1109 = vmatmul.bf16.gmra.mxu0 %v960
      %v1110 = vpop.f32.mrf.mxu0
      %v1111 = vadd.f32 %v624, %v1110
      %v1112 = vpop.f32.mrf.mxu0
      %v1113 = vadd.f32 %v629, %v1112
      %1114 = vmatmul.bf16.gmra.mxu0 %v963
      %v1115 = vpop.f32.mrf.mxu0
      %v1116 = vadd.f32 %v634, %v1115
      %v1117 = vpop.f32.mrf.mxu0
      %v1118 = vadd.f32 %v639, %v1117
      %1119 = vmatmul.bf16.gmra.mxu0 %v966
      %v1120 = vpop.f32.mrf.mxu0
      %v1121 = vadd.f32 %v644, %v1120
      %v1122 = vpop.f32.mrf.mxu0
      %v1123 = vadd.f32 %v649, %v1122
      %1124 = vmatmul.bf16.gmra.mxu0 %v969
      %v1125 = vpop.f32.mrf.mxu0
      %v1126 = vadd.f32 %v654, %v1125
      %v1127 = vpop.f32.mrf.mxu0
      %v1128 = vadd.f32 %v659, %v1127
      %1129 = vmatmul.bf16.gmra.mxu0 %v972
      %v1130 = vpop.f32.mrf.mxu0
      %v1131 = vadd.f32 %v664, %v1130
      %v1132 = vpop.f32.mrf.mxu0
      %v1133 = vadd.f32 %v669, %v1132
      %1134 = vmatmul.bf16.gmra.mxu0 %v975
      %v1135 = vpop.f32.mrf.mxu0
      %v1136 = vadd.f32 %v674, %v1135
      %v1137 = vpop.f32.mrf.mxu0
      %v1138 = vadd.f32 %v679, %v1137
      %1139 = vmatmul.bf16.gmra.mxu0 %v978
      %v1140 = vpop.f32.mrf.mxu0
      %v1141 = vadd.f32 %v684, %v1140
      %v1142 = vpop.f32.mrf.mxu0
      %v1143 = vadd.f32 %v689, %v1142
      %1144 = vmatmul.bf16.gmra.mxu0 %v981
      %v1145 = vpop.f32.mrf.mxu0
      %v1146 = vadd.f32 %v694, %v1145
      %v1147 = vpop.f32.mrf.mxu0
      %v1148 = vadd.f32 %v699, %v1147
      %1149 = vmatmul.bf16.gmra.mxu0 %v984
      %v1150 = vpop.f32.mrf.mxu0
      %v1151 = vadd.f32 %v704, %v1150
      %v1152 = vpop.f32.mrf.mxu0
      %v1153 = vadd.f32 %v709, %v1152
      %1154 = vdwg.mxu0
      %v1155 = vmax.f32 %v996, 0.0
      %v1156 = vmax.f32 %v998, 0.0
      %v1157 = vmax.f32 %v1001, 0.0
      %v1158 = vmax.f32 %v1003, 0.0
      %v1159 = vmax.f32 %v1006, 0.0
      %v1160 = vmax.f32 %v1008, 0.0
      %v1161 = vmax.f32 %v1011, 0.0
      %v1162 = vmax.f32 %v1013, 0.0
      %v1163 = vmax.f32 %v1016, 0.0
      %v1164 = vmax.f32 %v1018, 0.0
      %v1165 = vmax.f32 %v1021, 0.0
      %v1166 = vmax.f32 %v1023, 0.0
      %v1167 = vmax.f32 %v1026, 0.0
      %v1168 = vmax.f32 %v1028, 0.0
      %v1169 = vmax.f32 %v1031, 0.0
      %v1170 = vmax.f32 %v1033, 0.0
      %v1171 = vmax.f32 %v1036, 0.0
      %v1172 = vmax.f32 %v1038, 0.0
      %v1173 = vmax.f32 %v1041, 0.0
      %v1174 = vmax.f32 %v1043, 0.0
      %v1175 = vmax.f32 %v1046, 0.0
      %v1176 = vmax.f32 %v1048, 0.0
      %v1177 = vmax.f32 %v1051, 0.0
      %v1178 = vmax.f32 %v1053, 0.0
      %v1179 = vmax.f32 %v1056, 0.0
      %v1180 = vmax.f32 %v1058, 0.0
      %v1181 = vmax.f32 %v1061, 0.0
      %v1182 = vmax.f32 %v1063, 0.0
      %v1183 = vmax.f32 %v1066, 0.0
      %v1184 = vmax.f32 %v1068, 0.0
      %v1185 = vmax.f32 %v1071, 0.0
      %v1186 = vmax.f32 %v1073, 0.0
      %v1187 = vmax.f32 %v1076, 0.0
      %v1188 = vmax.f32 %v1078, 0.0
      %v1189 = vmax.f32 %v1081, 0.0
      %v1190 = vmax.f32 %v1083, 0.0
      %v1191 = vmax.f32 %v1086, 0.0
      %v1192 = vmax.f32 %v1088, 0.0
      %v1193 = vmax.f32 %v1091, 0.0
      %v1194 = vmax.f32 %v1093, 0.0
      %v1195 = vmax.f32 %v1096, 0.0
      %v1196 = vmax.f32 %v1098, 0.0
      %v1197 = vmax.f32 %v1101, 0.0
      %v1198 = vmax.f32 %v1103, 0.0
      %v1199 = vmax.f32 %v1106, 0.0
      %v1200 = vmax.f32 %v1108, 0.0
      %v1201 = vmax.f32 %v1111, 0.0
      %v1202 = vmax.f32 %v1113, 0.0
      %v1203 = vmax.f32 %v1116, 0.0
      %v1204 = vmax.f32 %v1118, 0.0
      %v1205 = vmax.f32 %v1121, 0.0
      %v1206 = vmax.f32 %v1123, 0.0
      %v1207 = vmax.f32 %v1126, 0.0
      %v1208 = vmax.f32 %v1128, 0.0
      %v1209 = vmax.f32 %v1131, 0.0
      %v1210 = vmax.f32 %v1133, 0.0
      %v1211 = vmax.f32 %v1136, 0.0
      %v1212 = vmax.f32 %v1138, 0.0
      %v1213 = vmax.f32 %v1141, 0.0
      %v1214 = vmax.f32 %v1143, 0.0
      %v1215 = vmax.f32 %v1146, 0.0
      %v1216 = vmax.f32 %v1148, 0.0
      %v1217 = vmax.f32 %v1151, 0.0
      %v1218 = vmax.f32 %v1153, 0.0
      %v1219 = vld [vmem:[%s3] sm:$0xff]
      %v1220 = vld [vmem:[%s3 + $0x8] sm:$0xff]
      %v1221 = vld [vmem:[%s3 + $0x10] sm:$0xff]
      %v1222 = vld [vmem:[%s3 + $0x18] sm:$0xff]
      %v1223 = vpack.c.bf16 %v1156, %v1155
      %v1224 = vpack.c.bf16 %v1158, %v1157
      %v1225 = vpack.c.bf16 %v1160, %v1159
      %v1226 = vpack.c.bf16 %v1162, %v1161
      %v1227 = vpack.c.bf16 %v1164, %v1163
      %v1228 = vpack.c.bf16 %v1166, %v1165
      %v1229 = vpack.c.bf16 %v1168, %v1167
      %v1230 = vpack.c.bf16 %v1170, %v1169
      %v1231 = vpack.c.bf16 %v1172, %v1171
      %v1232 = vpack.c.bf16 %v1174, %v1173
      %v1233 = vpack.c.bf16 %v1176, %v1175
      %v1234 = vpack.c.bf16 %v1178, %v1177
      %v1235 = vpack.c.bf16 %v1180, %v1179
      %v1236 = vpack.c.bf16 %v1182, %v1181
      %v1237 = vpack.c.bf16 %v1184, %v1183
      %v1238 = vpack.c.bf16 %v1186, %v1185
      %v1239 = vpack.c.bf16 %v1188, %v1187
      %v1240 = vpack.c.bf16 %v1190, %v1189
      %v1241 = vpack.c.bf16 %v1192, %v1191
      %v1242 = vpack.c.bf16 %v1194, %v1193
      %v1243 = vpack.c.bf16 %v1196, %v1195
      %v1244 = vpack.c.bf16 %v1198, %v1197
      %v1245 = vpack.c.bf16 %v1200, %v1199
      %v1246 = vpack.c.bf16 %v1202, %v1201
      %v1247 = vpack.c.bf16 %v1204, %v1203
      %v1248 = vpack.c.bf16 %v1206, %v1205
      %v1249 = vpack.c.bf16 %v1208, %v1207
      %v1250 = vpack.c.bf16 %v1210, %v1209
      %v1251 = vpack.c.bf16 %v1212, %v1211
      %v1252 = vpack.c.bf16 %v1214, %v1213
      %v1253 = vpack.c.bf16 %v1216, %v1215
      %v1254 = vpack.c.bf16 %v1218, %v1217
      %v1255 = vld [vmem:[%s4] sm:$0xff]
      %v1256 = vld [vmem:[%s4 + $0x8] sm:$0xff]
      %1258 = vset.pattern.permute.xlu0 0
      %1259 = vperm.xlu0 %1258, %v1255
      %v1260 = vpop.permute.xlu0 %1259
      %1263 = vset.pattern.permute.xlu0 0
      %1264 = vperm.xlu0 %1263, %v1256
      %v1265 = vpop.permute.xlu0 %1264
      %v1271 = vunpack.c.l.b16 %v1219
      %v1272 = vunpack.c.h.b16 %v1219
      %v1273 = vunpack.c.l.b16 %v1220
      %v1274 = vunpack.c.h.b16 %v1220
      %v1275 = vunpack.c.l.b16 %v1221
      %v1276 = vunpack.c.h.b16 %v1221
      %v1277 = vunpack.c.l.b16 %v1222
      %v1278 = vunpack.c.h.b16 %v1222
      %v1279 = vpack.c.b16 %v1275, %v1271
      %v1280 = vpack.c.b16 %v1276, %v1272
      %v1281 = vpack.c.b16 %v1277, %v1273
      %v1282 = vpack.c.b16 %v1278, %v1274
      %1287 = vmatpush.bf16.msra.mxu0 %v1230
      %1288 = vmatpush.bf16.msra.mxu0 %v1229
      %1289 = vmatpush.bf16.msra.mxu0 %v1228
      %1290 = vmatpush.bf16.msra.mxu0 %v1227
      %1291 = vmatpush.bf16.msra.mxu0 %v1226
      %1292 = vmatpush.bf16.msra.mxu0 %v1225
      %1293 = vmatpush.bf16.msra.mxu0 %v1224
      %1294 = vmatpush.bf16.msra.mxu0 %v1223
      %1295 = vmatmul.bf16.gmra.mxu0 %v1279
      %v1296 = vpop.f32.mrf.mxu0
      %v1297 = vadd.f32 %v1260, %v1296
      %v1298 = vpop.f32.mrf.mxu0
      %v1299 = vadd.f32 %v1265, %v1298
      %1300 = vdwg.mxu0
      %1301 = vmatpush.bf16.msra.mxu0 %v1238
      %1302 = vmatpush.bf16.msra.mxu0 %v1237
      %1303 = vmatpush.bf16.msra.mxu0 %v1236
      %1304 = vmatpush.bf16.msra.mxu0 %v1235
      %1305 = vmatpush.bf16.msra.mxu0 %v1234
      %1306 = vmatpush.bf16.msra.mxu0 %v1233
      %1307 = vmatpush.bf16.msra.mxu0 %v1232
      %1308 = vmatpush.bf16.msra.mxu0 %v1231
      %1309 = vmatmul.bf16.gmra.mxu0 %v1280
      %v1310 = vpop.f32.mrf.mxu0
      %v1311 = vadd.f32 %v1297, %v1310
      %v1312 = vpop.f32.mrf.mxu0
      %v1313 = vadd.f32 %v1299, %v1312
      %1314 = vdwg.mxu0
      %1315 = vmatpush.bf16.msra.mxu0 %v1246
      %1316 = vmatpush.bf16.msra.mxu0 %v1245
      %1317 = vmatpush.bf16.msra.mxu0 %v1244
      %1318 = vmatpush.bf16.msra.mxu0 %v1243
      %1319 = vmatpush.bf16.msra.mxu0 %v1242
      %1320 = vmatpush.bf16.msra.mxu0 %v1241
      %1321 = vmatpush.bf16.msra.mxu0 %v1240
      %1322 = vmatpush.bf16.msra.mxu0 %v1239
      %1323 = vmatmul.bf16.gmra.mxu0 %v1281
      %v1324 = vpop.f32.mrf.mxu0
      %v1325 = vadd.f32 %v1311, %v1324
      %v1326 = vpop.f32.mrf.mxu0
      %v1327 = vadd.f32 %v1313, %v1326
      %1328 = vdwg.mxu0
      %1329 = vmatpush.bf16.msra.mxu0 %v1254
      %1330 = vmatpush.bf16.msra.mxu0 %v1253
      %1331 = vmatpush.bf16.msra.mxu0 %v1252
      %1332 = vmatpush.bf16.msra.mxu0 %v1251
      %1333 = vmatpush.bf16.msra.mxu0 %v1250
      %1334 = vmatpush.bf16.msra.mxu0 %v1249
      %1335 = vmatpush.bf16.msra.mxu0 %v1248
      %1336 = vmatpush.bf16.msra.mxu0 %v1247
      %1337 = vmatmul.bf16.gmra.mxu0 %v1282
      %v1338 = vpop.f32.mrf.mxu0
      %v1339 = vadd.f32 %v1325, %v1338
      %v1340 = vpop.f32.mrf.mxu0
      %v1341 = vadd.f32 %v1327, %v1340
      %1342 = vdwg.mxu0
      %1343 = vst [vmem:[%s255] sm:$0xff] %v1339
      %1344 = vst [vmem:[%s255 + $0x8] sm:$0xff] %v1341
      %p1345 = scmp.lt.s32.totalorder %s20, 1
      %s1346 = scalar_select %p1345, %s20, 1
      %p1347 = scmp.lt.s32.totalorder %s21, 0
      %s1348 = scalar_select %p1347, %s21, 0
      %s1349 = smul.addr %s1346, 2
      %s1350 = sadd.s32 %s1348, %s1349
      %s1351 = smul.addr %s1350, 8
      %s1352 = scalar_lea.vmem %s5, %s1351
      // Predicated region
      $region41: #{pose_regressor_forward.3} parent=39 // pred_check
        %p1353 = pneg %p160
      $region42: #{pose_regressor_forward.3} parent=39 // pred_check_branch
        %1355 = sbr.rel (%p1353) target = $region44
      $region43: #{pose_regressor_forward.3} parent=39 // pred_region
        _
      $region44: #{pose_regressor_forward.3} parent=39 // pred_fallthru
        _
    $region40: #{pose_regressor_forward.3} parent=5 // pred_fallthru
      _
    %p1356 = scmp.le.s32.totalorder 2, %s11
    // Predicated region
    $region45: #{pose_regressor_forward.3} parent=5 // pred_check
      %p1357 = pneg %p1356
    $region46: #{pose_regressor_forward.3} parent=5 // pred_check_branch
      %1359 = sbr.rel (%p1357) target = $region48
    $region47: #{pose_regressor_forward.3} parent=5 // pred_region
      %s1360 = ssub.s32 %s11, 2
      // Predicated region
      $region49: #{pose_regressor_forward.3} parent=47 // pred_check
        %p1361 = pneg %p166
      $region50: #{pose_regressor_forward.3} parent=47 // pred_check_branch
        %1363 = sbr.rel (%p1361) target = $region52
      $region51: #{pose_regressor_forward.3} parent=47 // pred_region
        %p1364 = scmp.lt.s32.totalorder %s22, 1
        %s1365 = scalar_select %p1364, %s22, 1
        %p1366 = scmp.lt.s32.totalorder %s23, 0
        %s1367 = scalar_select %p1366, %s23, 0
        %s1368 = smul.addr %s1365, 2
        %s1369 = sadd.s32 %s1367, %s1368
        %s1370 = smul.addr %s1369, 8
        %s1371 = scalar_lea.vmem %s5, %s1370
      $region52: #{pose_regressor_forward.3} parent=47 // pred_fallthru
        _
    $region48: #{pose_regressor_forward.3} parent=5 // pred_fallthru
      _
  $region6: #{pose_regressor_forward.3} parent=0 // loop_footer
    %s15 = sadd.s32 1, %s11
  $region7: #{pose_regressor_forward.3} parent=0 // loop_footer_branch
    %10 = sbr.rel target = $region3
  $region8: #{pose_regressor_forward.3} parent=0 // loop_exit
    _

</llo_original>
